<compile_context>
chip_gen: v5e
topology: v5e:2x2
jax: 0.10.0
libtpu: 0.0.40
codegen_flags: <defaults>
</compile_context>

<pallas_src>
import functools

import jax
import jax.numpy as jnp
import numpy as np
from jax.experimental import pallas as pl
from jax.experimental.pallas import tpu as pltpu


# ---------------------------------------------------------------------------
# Kernel 1: fused QKV projection.
#   y = x @ [Wq*scale | Wk | Wv] + [bq*scale | bk | bv]   (one MXU matmul)
# and write q/k/v head-major: (H, TS, d_head), so the attention kernel does
# pure batched matmuls with no per-tile relayouts.
# ---------------------------------------------------------------------------
def _qkv_proj_kernel(x_ref, w_ref, b_ref, q_ref, k_ref, v_ref, *,
                     d_out: int, num_heads: int, compute_dtype):
    d_head = d_out // num_heads
    x = x_ref[0].astype(compute_dtype)                         # (TS, d_in)
    y = jnp.dot(x, w_ref[...], preferred_element_type=jnp.float32)
    y = (y + b_ref[...]).astype(compute_dtype)                 # (TS, 3*d_out)

    tile_rows = y.shape[0]

    def head_major(block):                                     # (TS, d_out) -> (H, TS, d_head)
        return jnp.transpose(block.reshape(tile_rows, num_heads, d_head),
                             (1, 0, 2))

    q_ref[0] = head_major(y[:, :d_out])
    k_ref[0] = head_major(y[:, d_out:2 * d_out])
    v_ref[0] = head_major(y[:, 2 * d_out:])


# ---------------------------------------------------------------------------
# Kernel 2: flash-style causal attention (online softmax) + fused out_proj.
# Grid: (batch, q_tile, kv_tile); kv_tile is the innermost "arbitrary" axis.
# Scratch (persist across kv tiles): running max m, running sum l, accumulator.
# ---------------------------------------------------------------------------
def _flash_attn_kernel(q_ref, k_ref, v_ref, wo_ref, bo_ref, o_ref,
                       m_sc, l_sc, acc_sc, *,
                       block_q: int, block_k: int, d_out: int, num_heads: int,
                       compute_dtype, approx_recip: bool):
    qi = pl.program_id(1)
    ki = pl.program_id(2)
    q_start = qi * block_q
    k_start = ki * block_k

    @pl.when(ki == 0)
    def _init():
        m_sc[...] = jnp.full_like(m_sc, -jnp.inf)
        l_sc[...] = jnp.zeros_like(l_sc)
        acc_sc[...] = jnp.zeros_like(acc_sc)

    # Skip kv tiles that lie entirely above the causal diagonal (~2x FLOP save).
    @pl.when(k_start <= q_start + block_q - 1)
    def _compute():
        q = q_ref[0]                                           # (H, TQ, Dh), already * 1/sqrt(d_out)
        k = k_ref[0]                                           # (H, TK, Dh)
        v = v_ref[0]                                           # (H, TK, Dh)

        # Head-batched QK^T on the MXU (f32 accumulation).
        s = jnp.einsum("hqd,hkd->hqk", q, k,
                       preferred_element_type=jnp.float32)     # (H, TQ, TK)

        # Tile-local causal mask from absolute indices (strict upper triangle).
        row = q_start + jax.lax.broadcasted_iota(jnp.int32, (block_q, block_k), 0)
        col = k_start + jax.lax.broadcasted_iota(jnp.int32, (block_q, block_k), 1)
        s = jnp.where((col > row)[None, :, :], -jnp.inf, s)

        # Online softmax update.
        m_prev = m_sc[...]                                     # (H, TQ, 1)
        m_new = jnp.maximum(m_prev, jnp.max(s, axis=-1, keepdims=True))
        alpha = jnp.exp(m_prev - m_new)                        # (H, TQ, 1)
        p = jnp.exp(s - m_new)                                 # (H, TQ, TK) f32

        l_sc[...] = alpha * l_sc[...] + jnp.sum(p, axis=-1, keepdims=True)
        acc_sc[...] = alpha * acc_sc[...] + jnp.einsum(
            "hqk,hkd->hqd", p.astype(compute_dtype), v,
            preferred_element_type=jnp.float32)                # (H, TQ, Dh)
        m_sc[...] = m_new

    @pl.when(ki == pl.num_programs(2) - 1)
    def _finalize():
        inv_l = pl.reciprocal(l_sc[...], approx=approx_recip)  # EUP when approx
        ctx = acc_sc[...] * inv_l                              # (H, TQ, Dh) f32
        # Merge heads once per q tile: (H, TQ, Dh) -> (TQ, d_out).
        ctx = jnp.transpose(ctx, (1, 0, 2)).reshape(block_q, d_out)
        out = jnp.dot(ctx.astype(compute_dtype), wo_ref[...],
                      preferred_element_type=jnp.float32) + bo_ref[...]
        o_ref[0] = out.astype(o_ref.dtype)


# ---------------------------------------------------------------------------
# Wrapper
# ---------------------------------------------------------------------------
def multi_head_attention(x, params, *, num_heads: int,
                         compute_dtype=jnp.bfloat16,
                         block_q: int = 256, block_k: int = 256,
                         block_s: int = 256,
                         vmem_limit_bytes=None):
    """x: (B, S, d_in).  params: dict of (in, out)-layout weights / biases."""
    B, S, d_in = x.shape
    d_out = params["wq"].shape[1]
    assert d_out % num_heads == 0
    d_head = d_out // num_heads

    # NOTE: the reference module scales by sqrt(d_out), NOT sqrt(d_head).
    scale = 1.0 / (float(d_out) ** 0.5)
    approx_recip = np.dtype(compute_dtype) != np.dtype(np.float32)

    # One-time param prep (would be pre-fused in real use): fuse Q/K/V weights
    # and fold the softmax scale into the Q projection.
    w_qkv = jnp.concatenate(
        [params["wq"] * scale, params["wk"], params["wv"]], axis=1
    ).astype(compute_dtype)                                    # (d_in, 3*d_out)
    b_qkv = jnp.concatenate(
        [params["bq"] * scale, params["bk"], params["bv"]], axis=1
    ).astype(jnp.float32)                                      # (1, 3*d_out)
    w_o = params["wo"].astype(compute_dtype)
    b_o = params["bo"].astype(jnp.float32)

    # Tile sizes (sized so k/v/q blocks + (H,TQ,TK) f32 score tile fit well
    # inside v7x's 64 MiB VMEM budget at realistic d_model).
    ts = min(block_s, S)
    tq = min(block_q, S)
    tk = min(block_k, S)
    n_s = pl.cdiv(S, ts)
    n_q = pl.cdiv(S, tq)
    n_k = pl.cdiv(S, tk)

    def _run(weight_mode):
        def wspec(shape):
            idx = lambda *_: (0,) * len(shape)
            if weight_mode is None:
                return pl.BlockSpec(shape, idx)
            return pl.BlockSpec(shape, idx, pipeline_mode=weight_mode)

        extra_cp = {}
        if vmem_limit_bytes is not None:
            extra_cp["vmem_limit_bytes"] = vmem_limit_bytes

        # ---- Kernel 1: fused QKV projection, head-major output layout ----
        qkv_shape = jax.ShapeDtypeStruct((B, num_heads, S, d_head), compute_dtype)
        q, k, v = pl.pallas_call(
            functools.partial(_qkv_proj_kernel, d_out=d_out,
                              num_heads=num_heads, compute_dtype=compute_dtype),
            out_shape=(qkv_shape, qkv_shape, qkv_shape),
            grid=(B, n_s),
            in_specs=[
                pl.BlockSpec((1, ts, d_in), lambda b, si: (b, si, 0)),
                wspec((d_in, 3 * d_out)),
                wspec((1, 3 * d_out)),
            ],
            out_specs=[
                pl.BlockSpec((1, num_heads, ts, d_head), lambda b, si: (b, 0, si, 0)),
                pl.BlockSpec((1, num_heads, ts, d_head), lambda b, si: (b, 0, si, 0)),
                pl.BlockSpec((1, num_heads, ts, d_head), lambda b, si: (b, 0, si, 0)),
            ],
            compiler_params=pltpu.CompilerParams(
                dimension_semantics=("parallel", "parallel"), **extra_cp),
        )(x, w_qkv, b_qkv)

        # ---- Kernel 2: flash attention + fused output projection ----
        out = pl.pallas_call(
            functools.partial(_flash_attn_kernel, block_q=tq, block_k=tk,
                              d_out=d_out, num_heads=num_heads,
                              compute_dtype=compute_dtype,
                              approx_recip=approx_recip),
            out_shape=jax.ShapeDtypeStruct((B, S, d_out), x.dtype),
            grid=(B, n_q, n_k),
            in_specs=[
                pl.BlockSpec((1, num_heads, tq, d_head), lambda b, qi, ki: (b, 0, qi, 0)),
                pl.BlockSpec((1, num_heads, tk, d_head), lambda b, qi, ki: (b, 0, ki, 0)),
                pl.BlockSpec((1, num_heads, tk, d_head), lambda b, qi, ki: (b, 0, ki, 0)),
                wspec((d_out, d_out)),
                wspec((1, d_out)),
            ],
            out_specs=pl.BlockSpec((1, tq, d_out), lambda b, qi, ki: (b, qi, 0)),
            scratch_shapes=[
                pltpu.VMEM((num_heads, tq, 1), jnp.float32),       # running max
                pltpu.VMEM((num_heads, tq, 1), jnp.float32),       # running sum
                pltpu.VMEM((num_heads, tq, d_head), jnp.float32),  # accumulator
            ],
            compiler_params=pltpu.CompilerParams(
                dimension_semantics=("parallel", "parallel", "arbitrary"),
                **extra_cp),
        )(q, k, v, w_o, b_o)
        return out

    try:
        # Grid-invariant weights don't need double-buffering: single-buffer
        # them to reclaim VMEM for bigger attention tiles.
        return _run(pl.Buffered(1))
    except Exception:
        # TODO(synk): fall back to default double-buffering if this Pallas
        # build rejects pipeline_mode=pl.Buffered(1) on pallas_call inputs.
        return _run(None)


# ---------------------------------------------------------------------------
# Pure-JAX reference mirroring the PyTorch forward exactly.
# ---------------------------------------------------------------------------
def _reference(x, params, num_heads):
    B, S, d_in = x.shape
    d_out = params["wq"].shape[1]
    d_head = d_out // num_heads

    q = x @ params["wq"] + params["bq"]
    k = x @ params["wk"] + params["bk"]
    v = x @ params["wv"] + params["bv"]

    q = q.reshape(B, S, num_heads, d_head).transpose(0, 2, 1, 3)
    k = k.reshape(B, S, num_heads, d_head).transpose(0, 2, 1, 3)
    v = v.reshape(B, S, num_heads, d_head).transpose(0, 2, 1, 3)

    scores = jnp.einsum("bhqd,bhkd->bhqk", q, k)
    mask = jnp.triu(jnp.ones((S, S), bool), k=1)
    scores = jnp.where(mask[None, None], -jnp.inf, scores)
    weights = jax.nn.softmax(scores / (d_out ** 0.5), axis=-1)
    ctx = jnp.einsum("bhqk,bhkd->bhqd", weights, v)
    ctx = ctx.transpose(0, 2, 1, 3).reshape(B, S, d_out)
    return ctx @ params["wo"] + params["bo"]


if __name__ == "__main__":
    # Small, deterministic configuration consistent with the module.
    B, S = 2, 8
    d_in, d_out, num_heads = 32, 32, 4      # d_head = 8
    # max_context_length == S (mask covers the full sequence)

    key = jax.random.PRNGKey(0)
    ks = jax.random.split(key, 9)
    init = lambda k, shape, fan_in: (
        jax.random.uniform(k, shape, jnp.float32, -1.0, 1.0) / np.sqrt(fan_in))

    params = {
        "wq": init(ks[0], (d_in, d_out), d_in),
        "bq": init(ks[1], (1, d_out), d_in),
        "wk": init(ks[2], (d_in, d_out), d_in),
        "bk": init(ks[3], (1, d_out), d_in),
        "wv": init(ks[4], (d_in, d_out), d_in),
        "bv": init(ks[5], (1, d_out), d_in),
        "wo": init(ks[6], (d_out, d_out), d_out),
        "bo": init(ks[7], (1, d_out), d_out),
    }
    x = jax.random.normal(ks[8], (B, S, d_in), jnp.float32)

    ref = _reference(x, params, num_heads)

    # Exact-semantics path (f32 matmul inputs, exact reciprocal): tight check.
    out_f32 = jax.block_until_ready(
        multi_head_attention(x, params, num_heads=num_heads,
                             compute_dtype=jnp.float32))
    assert out_f32.shape == (B, S, d_out)
    np.testing.assert_allclose(np.asarray(out_f32), np.asarray(ref),
                               rtol=1e-4, atol=1e-4)

    # Default fast path (bf16 MXU inputs, f32 accumulation, approx reciprocal).
    out_bf16 = jax.block_until_ready(
        multi_head_attention(x, params, num_heads=num_heads))
    assert out_bf16.shape == (B, S, d_out)
    np.testing.assert_allclose(np.asarray(out_bf16), np.asarray(ref),
                               rtol=5e-2, atol=5e-2)

    print("KERNEL_OK")
</pallas_src>

<mosaic_0001>
module attributes {stable_mosaic.version = 11 : i64} {
  func.func @_qkv_proj_kernel(%arg0: i32, %arg1: i32, %arg2: memref<1x8x32xf32, #tpu.memory_space<vmem>>, %arg3: memref<32x96xf32, #tpu.memory_space<vmem>>, %arg4: memref<1x96xf32, #tpu.memory_space<vmem>>, %arg5: memref<1x4x8x8xf32, #tpu.memory_space<vmem>>, %arg6: memref<1x4x8x8xf32, #tpu.memory_space<vmem>>, %arg7: memref<1x4x8x8xf32, #tpu.memory_space<vmem>>) attributes {dimension_semantics = [#tpu.dimension_semantics<parallel>, #tpu.dimension_semantics<parallel>], iteration_bounds = array<i64: 2, 1>, scalar_prefetch = 0 : i64, scratch_operands = 0 : i64, tpu.core_type = #tpu.core_type<tc>, window_params = [{transform_indices = @transform_0, window_bounds = array<i64: 1, 8, 32>}, {pipeline_mode = #tpu.pipeline_mode<synchronous>, transform_indices = @transform_1, window_bounds = array<i64: 32, 96>}, {pipeline_mode = #tpu.pipeline_mode<synchronous>, transform_indices = @transform_2, window_bounds = array<i64: 1, 96>}, {transform_indices = @transform_3, window_bounds = array<i64: 1, 4, 8, 8>}, {transform_indices = @transform_4, window_bounds = array<i64: 1, 4, 8, 8>}, {transform_indices = @transform_5, window_bounds = array<i64: 1, 4, 8, 8>}]} {
    %c0 = arith.constant 0 : index
    %c0_0 = arith.constant 0 : index
    %c0_1 = arith.constant 0 : index
    %0 = vector.load %arg2[%c0, %c0_0, %c0_1] : memref<1x8x32xf32, #tpu.memory_space<vmem>>, vector<1x8x32xf32>
    %1 = vector.shape_cast %0 : vector<1x8x32xf32> to vector<8x32xf32>
    %c0_2 = arith.constant 0 : index
    %c0_3 = arith.constant 0 : index
    %2 = vector.load %arg3[%c0_2, %c0_3] : memref<32x96xf32, #tpu.memory_space<vmem>>, vector<32x96xf32>
    %cst = arith.constant dense<0.000000e+00> : vector<8x96xf32>
    %3 = tpu.matmul %1, %2, %cst {dimension_numbers = #tpu.dot_dimension_numbers<[1], [0], [0], [1], [0, 0, 1, 1], [], []>} : vector<8x32xf32>, vector<32x96xf32>, vector<8x96xf32> -> vector<8x96xf32>
    %c0_4 = arith.constant 0 : index
    %c0_5 = arith.constant 0 : index
    %4 = vector.load %arg4[%c0_4, %c0_5] : memref<1x96xf32, #tpu.memory_space<vmem>>, vector<1x96xf32>
    %5 = vector.broadcast %4 : vector<1x96xf32> to vector<8x96xf32>
    %6 = arith.addf %3, %5 : vector<8x96xf32>
    %7 = vector.extract_strided_slice %6 {offsets = [0, 0], sizes = [8, 32], strides = [1, 1]} : vector<8x96xf32> to vector<8x32xf32>
    %8 = vector.shape_cast %7 : vector<8x32xf32> to vector<8x4x8xf32>
    %9 = tpu.transpose %8, [1, 0, 2] : vector<8x4x8xf32> -> vector<4x8x8xf32>
    %c0_6 = arith.constant 0 : index
    %c0_7 = arith.constant 0 : index
    %c0_8 = arith.constant 0 : index
    %c0_9 = arith.constant 0 : index
    %10 = vector.load %arg5[%c0_6, %c0_7, %c0_8, %c0_9] : memref<1x4x8x8xf32, #tpu.memory_space<vmem>>, vector<1x4x8x8xf32>
    %11 = vector.shape_cast %10 : vector<1x4x8x8xf32> to vector<4x8x8xf32>
    %12 = vector.shape_cast %9 : vector<4x8x8xf32> to vector<1x4x8x8xf32>
    tpu.vector_store %arg5[%c0_6, %c0_7, %c0_8, %c0_9], %12 {strides = array<i32>} : memref<1x4x8x8xf32, #tpu.memory_space<vmem>>, vector<1x4x8x8xf32>,
    %13 = vector.extract_strided_slice %6 {offsets = [0, 32], sizes = [8, 32], strides = [1, 1]} : vector<8x96xf32> to vector<8x32xf32>
    %14 = vector.shape_cast %13 : vector<8x32xf32> to vector<8x4x8xf32>
    %15 = tpu.transpose %14, [1, 0, 2] : vector<8x4x8xf32> -> vector<4x8x8xf32>
    %c0_10 = arith.constant 0 : index
    %c0_11 = arith.constant 0 : index
    %c0_12 = arith.constant 0 : index
    %c0_13 = arith.constant 0 : index
    %16 = vector.load %arg6[%c0_10, %c0_11, %c0_12, %c0_13] : memref<1x4x8x8xf32, #tpu.memory_space<vmem>>, vector<1x4x8x8xf32>
    %17 = vector.shape_cast %16 : vector<1x4x8x8xf32> to vector<4x8x8xf32>
    %18 = vector.shape_cast %15 : vector<4x8x8xf32> to vector<1x4x8x8xf32>
    tpu.vector_store %arg6[%c0_10, %c0_11, %c0_12, %c0_13], %18 {strides = array<i32>} : memref<1x4x8x8xf32, #tpu.memory_space<vmem>>, vector<1x4x8x8xf32>,
    %19 = vector.extract_strided_slice %6 {offsets = [0, 64], sizes = [8, 32], strides = [1, 1]} : vector<8x96xf32> to vector<8x32xf32>
    %20 = vector.shape_cast %19 : vector<8x32xf32> to vector<8x4x8xf32>
    %21 = tpu.transpose %20, [1, 0, 2] : vector<8x4x8xf32> -> vector<4x8x8xf32>
    %c0_14 = arith.constant 0 : index
    %c0_15 = arith.constant 0 : index
    %c0_16 = arith.constant 0 : index
    %c0_17 = arith.constant 0 : index
    %22 = vector.load %arg7[%c0_14, %c0_15, %c0_16, %c0_17] : memref<1x4x8x8xf32, #tpu.memory_space<vmem>>, vector<1x4x8x8xf32>
    %23 = vector.shape_cast %22 : vector<1x4x8x8xf32> to vector<4x8x8xf32>
    %24 = vector.shape_cast %21 : vector<4x8x8xf32> to vector<1x4x8x8xf32>
    tpu.vector_store %arg7[%c0_14, %c0_15, %c0_16, %c0_17], %24 {strides = array<i32>} : memref<1x4x8x8xf32, #tpu.memory_space<vmem>>, vector<1x4x8x8xf32>,
    return
  }
  func.func @transform_0(%arg0: i32, %arg1: i32) -> (i32, i32, i32) {
    %c0_i32 = arith.constant 0 : i32
    %c0_i32_0 = arith.constant 0 : i32
    return %arg0, %arg1, %c0_i32 : i32, i32, i32
  }
  func.func @transform_1(%arg0: i32, %arg1: i32) -> (i32, i32) {
    %c0_i32 = arith.constant 0 : i32
    %c0_i32_0 = arith.constant 0 : i32
    %c0_i32_1 = arith.constant 0 : i32
    return %c0_i32, %c0_i32_0 : i32, i32
  }
  func.func @transform_2(%arg0: i32, %arg1: i32) -> (i32, i32) {
    %c0_i32 = arith.constant 0 : i32
    %c0_i32_0 = arith.constant 0 : i32
    %c0_i32_1 = arith.constant 0 : i32
    return %c0_i32, %c0_i32_0 : i32, i32
  }
  func.func @transform_3(%arg0: i32, %arg1: i32) -> (i32, i32, i32, i32) {
    %c0_i32 = arith.constant 0 : i32
    %c0_i32_0 = arith.constant 0 : i32
    %c0_i32_1 = arith.constant 0 : i32
    return %arg0, %c0_i32, %arg1, %c0_i32_0 : i32, i32, i32, i32
  }
  func.func @transform_4(%arg0: i32, %arg1: i32) -> (i32, i32, i32, i32) {
    %c0_i32 = arith.constant 0 : i32
    %c0_i32_0 = arith.constant 0 : i32
    %c0_i32_1 = arith.constant 0 : i32
    return %arg0, %c0_i32, %arg1, %c0_i32_0 : i32, i32, i32, i32
  }
  func.func @transform_5(%arg0: i32, %arg1: i32) -> (i32, i32, i32, i32) {
    %c0_i32 = arith.constant 0 : i32
    %c0_i32_0 = arith.constant 0 : i32
    %c0_i32_1 = arith.constant 0 : i32
    return %arg0, %c0_i32, %arg1, %c0_i32_0 : i32, i32, i32, i32
  }
}

module attributes {stable_mosaic.version = 11 : i64} {
  func.func @_qkv_proj_kernel(%arg0: i32, %arg1: i32, %arg2: memref<1x8x32xf32, #tpu.memory_space<vmem>>, %arg3: memref<32x96xf32, #tpu.memory_space<vmem>>, %arg4: memref<1x96xf32, #tpu.memory_space<vmem>>, %arg5: memref<1x4x8x8xf32, #tpu.memory_space<vmem>>, %arg6: memref<1x4x8x8xf32, #tpu.memory_space<vmem>>, %arg7: memref<1x4x8x8xf32, #tpu.memory_space<vmem>>) attributes {dimension_semantics = [#tpu.dimension_semantics<parallel>, #tpu.dimension_semantics<parallel>], iteration_bounds = array<i64: 2, 1>, scalar_prefetch = 0 : i64, scratch_operands = 0 : i64, tpu.core_type = #tpu.core_type<tc>, window_params = [{transform_indices = @transform_0, window_bounds = array<i64: 1, 8, 32>}, {pipeline_mode = #tpu.pipeline_mode<synchronous>, transform_indices = @transform_1, window_bounds = array<i64: 32, 96>}, {pipeline_mode = #tpu.pipeline_mode<synchronous>, transform_indices = @transform_2, window_bounds = array<i64: 1, 96>}, {transform_indices = @transform_3, window_bounds = array<i64: 1, 4, 8, 8>}, {transform_indices = @transform_4, window_bounds = array<i64: 1, 4, 8, 8>}, {transform_indices = @transform_5, window_bounds = array<i64: 1, 4, 8, 8>}]} {
    %c0 = arith.constant 0 : index
    %c0_0 = arith.constant 0 : index
    %c0_1 = arith.constant 0 : index
    %0 = vector.load %arg2[%c0, %c0_0, %c0_1] : memref<1x8x32xf32, #tpu.memory_space<vmem>>, vector<1x8x32xf32>
    %1 = vector.shape_cast %0 : vector<1x8x32xf32> to vector<8x32xf32>
    %c0_2 = arith.constant 0 : index
    %c0_3 = arith.constant 0 : index
    %2 = vector.load %arg3[%c0_2, %c0_3] : memref<32x96xf32, #tpu.memory_space<vmem>>, vector<32x96xf32>
    %cst = arith.constant dense<0.000000e+00> : vector<8x96xf32>
    %3 = tpu.matmul %1, %2, %cst {dimension_numbers = #tpu.dot_dimension_numbers<[1], [0], [0], [1], [0, 0, 1, 1], [], []>} : vector<8x32xf32>, vector<32x96xf32>, vector<8x96xf32> -> vector<8x96xf32>
    %c0_4 = arith.constant 0 : index
    %c0_5 = arith.constant 0 : index
    %4 = vector.load %arg4[%c0_4, %c0_5] : memref<1x96xf32, #tpu.memory_space<vmem>>, vector<1x96xf32>
    %5 = vector.broadcast %4 : vector<1x96xf32> to vector<8x96xf32>
    %6 = arith.addf %3, %5 : vector<8x96xf32>
    %7 = vector.extract_strided_slice %6 {offsets = [0, 0], sizes = [8, 32], strides = [1, 1]} : vector<8x96xf32> to vector<8x32xf32>
    %8 = vector.shape_cast %7 : vector<8x32xf32> to vector<8x4x8xf32>
    %9 = tpu.transpose %8, [1, 0, 2] : vector<8x4x8xf32> -> vector<4x8x8xf32>
    %c0_6 = arith.constant 0 : index
    %c0_7 = arith.constant 0 : index
    %c0_8 = arith.constant 0 : index
    %c0_9 = arith.constant 0 : index
    %10 = vector.load %arg5[%c0_6, %c0_7, %c0_8, %c0_9] : memref<1x4x8x8xf32, #tpu.memory_space<vmem>>, vector<1x4x8x8xf32>
    %11 = vector.shape_cast %10 : vector<1x4x8x8xf32> to vector<4x8x8xf32>
    %12 = vector.shape_cast %9 : vector<4x8x8xf32> to vector<1x4x8x8xf32>
    tpu.vector_store %arg5[%c0_6, %c0_7, %c0_8, %c0_9], %12 {strides = array<i32>} : memref<1x4x8x8xf32, #tpu.memory_space<vmem>>, vector<1x4x8x8xf32>,
    %13 = vector.extract_strided_slice %6 {offsets = [0, 32], sizes = [8, 32], strides = [1, 1]} : vector<8x96xf32> to vector<8x32xf32>
    %14 = vector.shape_cast %13 : vector<8x32xf32> to vector<8x4x8xf32>
    %15 = tpu.transpose %14, [1, 0, 2] : vector<8x4x8xf32> -> vector<4x8x8xf32>
    %c0_10 = arith.constant 0 : index
    %c0_11 = arith.constant 0 : index
    %c0_12 = arith.constant 0 : index
    %c0_13 = arith.constant 0 : index
    %16 = vector.load %arg6[%c0_10, %c0_11, %c0_12, %c0_13] : memref<1x4x8x8xf32, #tpu.memory_space<vmem>>, vector<1x4x8x8xf32>
    %17 = vector.shape_cast %16 : vector<1x4x8x8xf32> to vector<4x8x8xf32>
    %18 = vector.shape_cast %15 : vector<4x8x8xf32> to vector<1x4x8x8xf32>
    tpu.vector_store %arg6[%c0_10, %c0_11, %c0_12, %c0_13], %18 {strides = array<i32>} : memref<1x4x8x8xf32, #tpu.memory_space<vmem>>, vector<1x4x8x8xf32>,
    %19 = vector.extract_strided_slice %6 {offsets = [0, 64], sizes = [8, 32], strides = [1, 1]} : vector<8x96xf32> to vector<8x32xf32>
    %20 = vector.shape_cast %19 : vector<8x32xf32> to vector<8x4x8xf32>
    %21 = tpu.transpose %20, [1, 0, 2] : vector<8x4x8xf32> -> vector<4x8x8xf32>
    %c0_14 = arith.constant 0 : index
    %c0_15 = arith.constant 0 : index
    %c0_16 = arith.constant 0 : index
    %c0_17 = arith.constant 0 : index
    %22 = vector.load %arg7[%c0_14, %c0_15, %c0_16, %c0_17] : memref<1x4x8x8xf32, #tpu.memory_space<vmem>>, vector<1x4x8x8xf32>
    %23 = vector.shape_cast %22 : vector<1x4x8x8xf32> to vector<4x8x8xf32>
    %24 = vector.shape_cast %21 : vector<4x8x8xf32> to vector<1x4x8x8xf32>
    tpu.vector_store %arg7[%c0_14, %c0_15, %c0_16, %c0_17], %24 {strides = array<i32>} : memref<1x4x8x8xf32, #tpu.memory_space<vmem>>, vector<1x4x8x8xf32>,
    return
  }
  func.func @transform_0(%arg0: i32, %arg1: i32) -> (i32, i32, i32) {
    %c0_i32 = arith.constant 0 : i32
    %c0_i32_0 = arith.constant 0 : i32
    return %arg0, %arg1, %c0_i32 : i32, i32, i32
  }
  func.func @transform_1(%arg0: i32, %arg1: i32) -> (i32, i32) {
    %c0_i32 = arith.constant 0 : i32
    %c0_i32_0 = arith.constant 0 : i32
    %c0_i32_1 = arith.constant 0 : i32
    return %c0_i32, %c0_i32_0 : i32, i32
  }
  func.func @transform_2(%arg0: i32, %arg1: i32) -> (i32, i32) {
    %c0_i32 = arith.constant 0 : i32
    %c0_i32_0 = arith.constant 0 : i32
    %c0_i32_1 = arith.constant 0 : i32
    return %c0_i32, %c0_i32_0 : i32, i32
  }
  func.func @transform_3(%arg0: i32, %arg1: i32) -> (i32, i32, i32, i32) {
    %c0_i32 = arith.constant 0 : i32
    %c0_i32_0 = arith.constant 0 : i32
    %c0_i32_1 = arith.constant 0 : i32
    return %arg0, %c0_i32, %arg1, %c0_i32_0 : i32, i32, i32, i32
  }
  func.func @transform_4(%arg0: i32, %arg1: i32) -> (i32, i32, i32, i32) {
    %c0_i32 = arith.constant 0 : i32
    %c0_i32_0 = arith.constant 0 : i32
    %c0_i32_1 = arith.constant 0 : i32
    return %arg0, %c0_i32, %arg1, %c0_i32_0 : i32, i32, i32, i32
  }
  func.func @transform_5(%arg0: i32, %arg1: i32) -> (i32, i32, i32, i32) {
    %c0_i32 = arith.constant 0 : i32
    %c0_i32_0 = arith.constant 0 : i32
    %c0_i32_1 = arith.constant 0 : i32
    return %arg0, %c0_i32, %arg1, %c0_i32_0 : i32, i32, i32, i32
  }
}

</mosaic_0001>

<llo_original>
// kernel: tpu_custom_call.1
$region0: #{tpu_custom_call.1}
  #allocation0 [shape = 'u32[]', space=smem, size = 0x4, offset = 0x4, fixed_abs, tag = 'smem constant byte address 0x4 - core index']
  #allocation1 [shape = 'u32[72,128]{1,0:T(1,128)}', space=vmem, size = 0x9000, scoped, tag = 'internal scratch']
  %s0 = inlined_call_operand.hbm [shape: f32[2,8,32], index: 0, kind: input, shape index: {}]
  %s1 = inlined_call_operand.hbm [shape: f32[32,96], index: 1, kind: input, shape index: {}]
  %s2 = inlined_call_operand.vmem [shape: f32[1,96], index: 2, kind: input, shape index: {}]
  %s3 = inlined_call_operand.hbm [shape: f32[2,4,8,8], index: 3, kind: output, shape index: {0}]
  %s4 = inlined_call_operand.hbm [shape: f32[2,4,8,8], index: 4, kind: output, shape index: {1}]
  %s5 = inlined_call_operand.hbm [shape: f32[2,4,8,8], index: 5, kind: output, shape index: {2}]
  %6 = xla_tuple %s3, %s4, %s5
  %s7 = sld [smem:[#allocation0]]
  $region69: #{tpu_custom_call.1} parent=0
    _
  %s9 = ssub.s32 1, %s7
  %s10 = scalar_select 0, %s9, %s7
  $region1: #{tpu_custom_call.1} parent=0
    #allocation2 [shape = 'u8[8192]{0}', space=vmem, size = 0x2000, scoped, tag = 'input window, operand 0']
    #allocation3 [shape = 's32[2]{0}', space=sflag, size = 0x8, scoped, tag = 'scoped memory for tpu_custom_call.1']
    #allocation4 [shape = 's32[2]{0}', space=sflag, size = 0x8, scoped, tag = 'scoped memory for tpu_custom_call.1']
    #allocation5 [shape = 'u8[16384]{0}', space=vmem, size = 0x4000, scoped, tag = 'input window, operand 1, single buffered']
    #allocation6 [shape = 's32[1]{0}', space=sflag, size = 0x4, scoped, tag = 'scoped memory for tpu_custom_call.1']
    #allocation7 [shape = 'u8[32768]{0}', space=vmem, size = 0x8000, scoped, tag = 'output window, operand 0']
    #allocation8 [shape = 'u8[32768]{0}', space=vmem, size = 0x8000, scoped, tag = 'output window, operand 1']
    #allocation9 [shape = 's32[2]{0}', space=sflag, size = 0x8, scoped, tag = 'scoped memory for tpu_custom_call.1']
    #allocation10 [shape = 'u8[32768]{0}', space=vmem, size = 0x8000, scoped, tag = 'output window, operand 2']
    %11 = vsyncpa [#allocation3], 0
    %s12 = scalar_lea.sflag [#allocation3], 1
    %13 = vsyncpa %s12, 0
    %14 = vsyncpa [#allocation6], 0
    %15 = vsyncpa [#allocation4], 0
    %s16 = scalar_lea.sflag [#allocation4], 1
    %17 = vsyncpa %s16, 0
    %18 = vsyncpa [#allocation9], 0
    %s19 = scalar_lea.sflag [#allocation9], 1
    %20 = vsyncpa %s19, 0
    loop: start=0, step=1, limit=4
    $region2: #{tpu_custom_call.1} parent=1 // loop_pre_header
      _
    $region3: #{tpu_custom_call.1} parent=1 // loop_header
      %s22 = sphi 0, %s26
      %p23 = scmp.ge.s32.totalorder %s22, 4
      %s29 = sphi 0, %s41
      %s30 = sphi 0, %s37
      %s31 = sphi 0, %s29
      %s32 = sphi 0, %s30
      %s33 = sphi 0, %s31
      %s34 = sphi 0, %s32
      %s46 = sphi 0, %s48
      %s49 = sphi 0, %s46
      %s50 = sphi 0, %s49
      %s66 = sphi 0, %s50
      %s70 = sphi 0, %s70
      %s72 = sphi 0, %s70
      %s73 = sphi 0, %s72
      %s87 = sphi 0, %s73
      %s91 = sphi 0, %s91
      %s93 = sphi 0, %s91
      %s94 = sphi 0, %s93
      %s108 = sphi 0, %s94
      %s116 = sphi 0, %s118
      %s119 = sphi 0, %s116
      %s120 = sphi 0, %s119
      %s136 = sphi 0, %s120
      %s144 = sphi 0, %s146
      %s147 = sphi 0, %s144
      %s148 = sphi 0, %s147
      %s164 = sphi 0, %s148
      %s172 = sphi 0, %s174
      %s175 = sphi 0, %s172
      %s176 = sphi 0, %s175
      %s192 = sphi 0, %s176
    $region4: #{tpu_custom_call.1} parent=1 // loop_header_branch
      %25 = sbr.rel (%p23) target = $region8
    $region5: #{tpu_custom_call.1} parent=1 // loop_body
      %s27 = ssub.s32 %s22, 1
      %s28 = ssub.s32 %s22, 2
      %s35 = sadd.s32 1, %s30
      %p36 = scmp.ge.s32.totalorder %s35, 1
      %s37 = scalar_select %p36, 0, %s35
      %s38 = sadd.s32 1, %s29
      %s39 = scalar_select %p36, %s38, %s29
      %p40 = scmp.ge.s32.totalorder %s39, 2
      %s41 = scalar_select %p40, 0, %s39
      %s42 = ssub.s32 %s29, %s41
      %s43 = ssub.s32 %s30, %s37
      %s44 = sor.u32 %s42, %s43
      %p45 = scmp.eq.s32.totalorder %s44, 0
      %s47 = sadd.s32 %s46, 1
      %s48 = scalar_select %p45, %s46, %s47
      %p51 = pneg %p45
      %p52 = scmp.eq.s32.totalorder %s22, 1
      %p53 = por %p51, %p52
      %p54 = scmp.ne.s32.totalorder %s46, %s49
      %p55 = scmp.eq.s32.totalorder %s22, 0
      %p56 = por %p54, %p55
      %p57 = scmp.ne.s32.totalorder %s46, %s49
      %p58 = scmp.eq.s32.totalorder %s27, 1
      %p59 = por %p57, %p58
      %p60 = scmp.ne.s32.totalorder %s49, %s50
      %p61 = scmp.eq.s32.totalorder %s27, 0
      %p62 = por %p60, %p61
      %p63 = scmp.ne.s32.totalorder %s49, %s50
      %p64 = scmp.eq.s32.totalorder %s28, 1
      %p65 = por %p63, %p64
      %p67 = scmp.ne.s32.totalorder %s50, %s66
      %p68 = scmp.eq.s32.totalorder %s28, 0
      %p69 = por %p67, %p68
      %s71 = sadd.s32 %s70, 1
      %p74 = scmp.eq.s32.totalorder %s22, 1
      %p75 = scmp.ne.s32.totalorder %s70, %s72
      %p76 = scmp.eq.s32.totalorder %s22, 0
      %p77 = por %p75, %p76
      %p78 = scmp.ne.s32.totalorder %s70, %s72
      %p79 = scmp.eq.s32.totalorder %s27, 1
      %p80 = por %p78, %p79
      %p81 = scmp.ne.s32.totalorder %s72, %s73
      %p82 = scmp.eq.s32.totalorder %s27, 0
      %p83 = por %p81, %p82
      %p84 = scmp.ne.s32.totalorder %s72, %s73
      %p85 = scmp.eq.s32.totalorder %s28, 1
      %p86 = por %p84, %p85
      %p88 = scmp.ne.s32.totalorder %s73, %s87
      %p89 = scmp.eq.s32.totalorder %s28, 0
      %p90 = por %p88, %p89
      %s92 = sadd.s32 %s91, 1
      %p95 = scmp.eq.s32.totalorder %s22, 1
      %p96 = scmp.ne.s32.totalorder %s91, %s93
      %p97 = scmp.eq.s32.totalorder %s22, 0
      %p98 = por %p96, %p97
      %p99 = scmp.ne.s32.totalorder %s91, %s93
      %p100 = scmp.eq.s32.totalorder %s27, 1
      %p101 = por %p99, %p100
      %p102 = scmp.ne.s32.totalorder %s93, %s94
      %p103 = scmp.eq.s32.totalorder %s27, 0
      %p104 = por %p102, %p103
      %p105 = scmp.ne.s32.totalorder %s93, %s94
      %p106 = scmp.eq.s32.totalorder %s28, 1
      %p107 = por %p105, %p106
      %p109 = scmp.ne.s32.totalorder %s94, %s108
      %p110 = scmp.eq.s32.totalorder %s28, 0
      %p111 = por %p109, %p110
      %s112 = ssub.s32 %s29, %s41
      %s113 = ssub.s32 %s30, %s37
      %s114 = sor.u32 %s112, %s113
      %p115 = scmp.eq.s32.totalorder %s114, 0
      %s117 = sadd.s32 %s116, 1
      %s118 = scalar_select %p115, %s116, %s117
      %p121 = pneg %p115
      %p122 = scmp.eq.s32.totalorder %s22, 1
      %p123 = por %p121, %p122
      %p124 = scmp.ne.s32.totalorder %s116, %s119
      %p125 = scmp.eq.s32.totalorder %s22, 0
      %p126 = por %p124, %p125
      %p127 = scmp.ne.s32.totalorder %s116, %s119
      %p128 = scmp.eq.s32.totalorder %s27, 1
      %p129 = por %p127, %p128
      %p130 = scmp.ne.s32.totalorder %s119, %s120
      %p131 = scmp.eq.s32.totalorder %s27, 0
      %p132 = por %p130, %p131
      %p133 = scmp.ne.s32.totalorder %s119, %s120
      %p134 = scmp.eq.s32.totalorder %s28, 1
      %p135 = por %p133, %p134
      %p137 = scmp.ne.s32.totalorder %s120, %s136
      %p138 = scmp.eq.s32.totalorder %s28, 0
      %p139 = por %p137, %p138
      %s140 = ssub.s32 %s29, %s41
      %s141 = ssub.s32 %s30, %s37
      %s142 = sor.u32 %s140, %s141
      %p143 = scmp.eq.s32.totalorder %s142, 0
      %s145 = sadd.s32 %s144, 1
      %s146 = scalar_select %p143, %s144, %s145
      %p149 = pneg %p143
      %p150 = scmp.eq.s32.totalorder %s22, 1
      %p151 = por %p149, %p150
      %p152 = scmp.ne.s32.totalorder %s144, %s147
      %p153 = scmp.eq.s32.totalorder %s22, 0
      %p154 = por %p152, %p153
      %p155 = scmp.ne.s32.totalorder %s144, %s147
      %p156 = scmp.eq.s32.totalorder %s27, 1
      %p157 = por %p155, %p156
      %p158 = scmp.ne.s32.totalorder %s147, %s148
      %p159 = scmp.eq.s32.totalorder %s27, 0
      %p160 = por %p158, %p159
      %p161 = scmp.ne.s32.totalorder %s147, %s148
      %p162 = scmp.eq.s32.totalorder %s28, 1
      %p163 = por %p161, %p162
      %p165 = scmp.ne.s32.totalorder %s148, %s164
      %p166 = scmp.eq.s32.totalorder %s28, 0
      %p167 = por %p165, %p166
      %s168 = ssub.s32 %s29, %s41
      %s169 = ssub.s32 %s30, %s37
      %s170 = sor.u32 %s168, %s169
      %p171 = scmp.eq.s32.totalorder %s170, 0
      %s173 = sadd.s32 %s172, 1
      %s174 = scalar_select %p171, %s172, %s173
      %p177 = pneg %p171
      %p178 = scmp.eq.s32.totalorder %s22, 1
      %p179 = por %p177, %p178
      %p180 = scmp.ne.s32.totalorder %s172, %s175
      %p181 = scmp.eq.s32.totalorder %s22, 0
      %p182 = por %p180, %p181
      %p183 = scmp.ne.s32.totalorder %s172, %s175
      %p184 = scmp.eq.s32.totalorder %s27, 1
      %p185 = por %p183, %p184
      %p186 = scmp.ne.s32.totalorder %s175, %s176
      %p187 = scmp.eq.s32.totalorder %s27, 0
      %p188 = por %p186, %p187
      %p189 = scmp.ne.s32.totalorder %s175, %s176
      %p190 = scmp.eq.s32.totalorder %s28, 1
      %p191 = por %p189, %p190
      %p193 = scmp.ne.s32.totalorder %s176, %s192
      %p194 = scmp.eq.s32.totalorder %s28, 0
      %p195 = por %p193, %p194
      %p196 = scmp.le.s32.totalorder 1, %s22
      %p197 = scmp.lt.s32.totalorder %s22, 3
      %p198 = pnand %p196, %p197
      %p199 = pneg %p198
      // Predicated region
      $region9: #{tpu_custom_call.1} parent=5 // pred_check
        _
      $region10: #{tpu_custom_call.1} parent=5 // pred_check_branch
        %201 = sbr.rel (%p198) target = $region12
      $region11: #{tpu_custom_call.1} parent=5 // pred_region
        %s202 = ssub.s32 %s22, 1
        // Predicated region
        $region13: #{tpu_custom_call.1} parent=11 // pred_check
          %p203 = pneg %p83
        $region14: #{tpu_custom_call.1} parent=11 // pred_check_branch
          %205 = sbr.rel (%p203) target = $region16
        $region15: #{tpu_custom_call.1} parent=11 // pred_region
          %207 = vsyncadd [#allocation6], 0
          %s208 = sshll.u32 %s1, 4
          %s209 = int_to_ptr.hbm [resolvable:$true] %s208
          %s210 = sshll.u32 [#allocation5], 4
          %s211 = int_to_ptr.vmem [resolvable:$true] %s210
          %216 = dma.hbm_to_vmem [thread:$0]  %s209, 512, %s211, [#allocation6], 128, 128, 8
        $region16: #{tpu_custom_call.1} parent=11 // pred_fallthru
          _
        // Predicated region
        $region17: #{tpu_custom_call.1} parent=11 // pred_check
          %p217 = pneg %p104
        $region18: #{tpu_custom_call.1} parent=11 // pred_check_branch
          %219 = sbr.rel (%p217) target = $region20
        $region19: #{tpu_custom_call.1} parent=11 // pred_region
          _
        $region20: #{tpu_custom_call.1} parent=11 // pred_fallthru
          _
      $region12: #{tpu_custom_call.1} parent=5 // pred_fallthru
        _
      %p220 = scmp.lt.s32.totalorder %s22, 2
      // Predicated region
      $region21: #{tpu_custom_call.1} parent=5 // pred_check
        %p221 = pneg %p220
      $region22: #{tpu_custom_call.1} parent=5 // pred_check_branch
        %223 = sbr.rel (%p221) target = $region24
      $region23: #{tpu_custom_call.1} parent=5 // pred_region
        // Predicated region
        $region25: #{tpu_custom_call.1} parent=23 // pred_check
          %p224 = pneg %p56
        $region26: #{tpu_custom_call.1} parent=23 // pred_check_branch
          %226 = sbr.rel (%p224) target = $region28
        $region27: #{tpu_custom_call.1} parent=23 // pred_region
          %s227 = sand.u32 %s46, 1
          %s228 = scalar_lea.sflag [#allocation3], %s227
          %s229 = sand.u32 %s46, 1
          %s230 = smul.addr %s229, 8
          %s231 = scalar_lea.vmem [#allocation2], %s230
          %233 = vsyncadd %s228, 0
          %s234 = sadd.s32 %s30, %s29
          %s235 = smul.addr %s234, 8
          %s236 = scalar_lea.hbm %s0, %s235
          %s238 = sshll.u32 %s236, 4
          %s239 = int_to_ptr.hbm [resolvable:$true] %s238
          %s240 = sshll.u32 %s231, 4
          %s241 = int_to_ptr.vmem [resolvable:$true] %s240
          %243 = dma.hbm_to_vmem [thread:$0]  %s239, 128, %s241, %s228
        $region28: #{tpu_custom_call.1} parent=23 // pred_fallthru
          _
      $region24: #{tpu_custom_call.1} parent=5 // pred_fallthru
        _
      %p244 = scmp.le.s32.totalorder 1, %s22
      %p245 = scmp.lt.s32.totalorder %s22, 3
      %p246 = pnand %p244, %p245
      %p247 = pneg %p246
      // Predicated region
      $region29: #{tpu_custom_call.1} parent=5 // pred_check
        _
      $region30: #{tpu_custom_call.1} parent=5 // pred_check_branch
        %249 = sbr.rel (%p246) target = $region32
      $region31: #{tpu_custom_call.1} parent=5 // pred_region
        %s250 = ssub.s32 %s22, 1
        %s251 = sand.u32 %s49, 1
        %s252 = scalar_lea.sflag [#allocation3], %s251
        %s253 = sand.u32 %s49, 1
        %s254 = smul.addr %s253, 8
        %s255 = scalar_lea.vmem [#allocation2], %s254
        // Predicated region
        $region33: #{tpu_custom_call.1} parent=31 // pred_check
          %p256 = pneg %p62
        $region34: #{tpu_custom_call.1} parent=31 // pred_check_branch
          %258 = sbr.rel (%p256) target = $region36
        $region35: #{tpu_custom_call.1} parent=31 // pred_region
          %260 = dma.done %s252, 128
        $region36: #{tpu_custom_call.1} parent=31 // pred_fallthru
          _
        // Predicated region
        $region37: #{tpu_custom_call.1} parent=31 // pred_check
          %p261 = pneg %p83
        $region38: #{tpu_custom_call.1} parent=31 // pred_check_branch
          %263 = sbr.rel (%p261) target = $region40
        $region39: #{tpu_custom_call.1} parent=31 // pred_region
          %265 = dma.done [#allocation6], 512
        $region40: #{tpu_custom_call.1} parent=31 // pred_fallthru
          _
        %s266 = sand.u32 %s49, 1
        %s267 = scalar_lea.sflag [#allocation3], %s266
        %s268 = sand.u32 %s49, 1
        %s269 = smul.addr %s268, 8
        %s270 = scalar_lea.vmem [#allocation2], %s269
        %p271 = pneg %p62
        %p272 = pneg %p59
        %p273 = pneg %p83
        %p274 = pneg %p80
        %p275 = pneg %p104
        %p276 = pneg %p101
        %p277 = pneg %p132
        %p278 = pneg %p129
        %s279 = sand.u32 %s119, 1
        %s280 = scalar_lea.sflag [#allocation4], %s279
        %s281 = sand.u32 %s119, 1
        %s282 = smul.addr %s281, 32
        %s283 = scalar_lea.vmem [#allocation7], %s282
        %p284 = pneg %p160
        %p285 = pneg %p157
        %s286 = sand.u32 %s27, 1
        %s287 = scalar_lea.sflag [#allocation9], %s286
        %s288 = sand.u32 %s147, 1
        %s289 = smul.addr %s288, 32
        %s290 = scalar_lea.vmem [#allocation8], %s289
        %p291 = pneg %p188
        %p292 = pneg %p185
        %s293 = sand.u32 %s27, 1
        %s294 = scalar_lea.sflag [#allocation9], %s293
        %s295 = sand.u32 %s175, 1
        %s296 = smul.addr %s295, 32
        %s297 = scalar_lea.vmem [#allocation10], %s296
        %v298 = vld [vmem:[%s255] sm:$0xff]
        %v299 = vld [vmem:[#allocation5] sm:$0xff]
        %v300 = vld [vmem:[#allocation5 + $0x8] sm:$0xff]
        %v301 = vld [vmem:[#allocation5 + $0x10] sm:$0xff]
        %v302 = vld [vmem:[#allocation5 + $0x18] sm:$0xff]
        %v303 = vld [vmem:[%s2] sm:$0x1]
        %v305 = vperm.slane %v303, 0
        %vm307 = vcmask 261120
        %v309 = vsel %vm307, %v298, 0
        %311 = vmatpush.msra.mxu0 0.0
        %312 = vmatpush.msra.mxu0 0.0
        %313 = vmatpush.msra.mxu0 0.0
        %314 = vmatpush.msra.mxu0 0.0
        %315 = vmatpush.msra.mxu0 0.0
        %316 = vmatpush.msra.mxu0 0.0
        %317 = vmatpush.msra.mxu0 0.0
        %318 = vmatpush.msra.mxu0 0.0
        %319 = vmatpush.msra.mxu0 0.0
        %320 = vmatpush.msra.mxu0 0.0
        %321 = vmatpush.msra.mxu0 0.0
        %322 = vmatpush.msra.mxu0 0.0
        %323 = vmatpush.msra.mxu0 %v302
        %324 = vmatpush.msra.mxu0 %v301
        %325 = vmatpush.msra.mxu0 %v300
        %326 = vmatpush.msra.mxu0 %v299
        %327 = vmatmul.f32.gmra.mxu0 %v309
        %v328 = vpop.f32.mrf.mxu0
        %v329 = vadd.f32 %v305, %v328
        %330 = vdwg.mxu0
        %332 = vrot.lane.b32.xlu0 %v329, 120
        %v333 = vpop.permute.xlu0 %332
        %335 = vrot.lane.b32.xlu0 %v329, 112
        %v336 = vpop.permute.xlu0 %335
        %338 = vrot.lane.b32.xlu0 %v329, 104
        %v339 = vpop.permute.xlu0 %338
        %v341 = vrot.slane %v336, 4
        %vm342 = vcmask 1047556
        %v343 = vsel %vm342, %v341, %v329
        %v344 = vrot.slane %v329, 4
        %v345 = vsel %vm342, %v336, %v344
        %v347 = vunpack.c.l.s4 1983009808
        %v348 = vunpack.c.0.s8 %v347
        %v349 = vperm.slane %v343, %v348
        %v351 = vunpack.c.l.s4 1983009808
        %v352 = vunpack.c.0.s8 %v351
        %v353 = vperm.slane %v345, %v352
        %v354 = vrot.slane %v339, 4
        %v355 = vsel %vm342, %v354, %v333
        %v356 = vrot.slane %v333, 4
        %v357 = vsel %vm342, %v339, %v356
        %v359 = vunpack.c.l.s4 1983009808
        %v360 = vunpack.c.0.s8 %v359
        %v361 = vperm.slane %v355, %v360
        %v363 = vunpack.c.l.s4 1983009808
        %v364 = vunpack.c.0.s8 %v363
        %v365 = vperm.slane %v357, %v364
        %v366 = vrot.slane %v361, 4
        %v367 = vsel %vm342, %v366, %v349
        %v368 = vrot.slane %v349, 4
        %v369 = vsel %vm342, %v361, %v368
        %v371 = vunpack.c.l.s4 1934713408
        %v372 = vunpack.c.0.s8 %v371
        %v373 = vperm.slane %v367, %v372
        %v375 = vunpack.c.l.s4 1934713408
        %v376 = vunpack.c.0.s8 %v375
        %v377 = vperm.slane %v369, %v376
        %v378 = vrot.slane %v365, 4
        %v379 = vsel %vm342, %v378, %v353
        %v380 = vrot.slane %v353, 4
        %v381 = vsel %vm342, %v365, %v380
        %v383 = vunpack.c.l.s4 1934713408
        %v384 = vunpack.c.0.s8 %v383
        %v385 = vperm.slane %v379, %v384
        %v387 = vunpack.c.l.s4 1934713408
        %v388 = vunpack.c.0.s8 %v387
        %v389 = vperm.slane %v381, %v388
        %v390 = vrot.slane %v373, 4
        %v391 = vsel %vm342, 0.0, %v390
        %v392 = vrot.slane %v377, 4
        %v393 = vsel %vm342, 0.0, %v392
        %v394 = vrot.slane %v385, 4
        %v395 = vsel %vm342, 0.0, %v394
        %v396 = vrot.slane %v389, 4
        %v397 = vsel %vm342, 0.0, %v396
        %v398 = vsel %vm342, %v392, %v373
        %v400 = vunpack.c.l.s4 1983009808
        %v401 = vunpack.c.0.s8 %v400
        %v402 = vperm.slane %v398, %v401
        %v403 = vrot.slane %v393, 4
        %v404 = vsel %vm342, %v403, %v391
        %v406 = vunpack.c.l.s4 1983009808
        %v407 = vunpack.c.0.s8 %v406
        %v408 = vperm.slane %v404, %v407
        %v409 = vsel %vm342, %v396, %v385
        %v411 = vunpack.c.l.s4 1983009808
        %v412 = vunpack.c.0.s8 %v411
        %v413 = vperm.slane %v409, %v412
        %v414 = vrot.slane %v397, 4
        %v415 = vsel %vm342, %v414, %v395
        %v417 = vunpack.c.l.s4 1983009808
        %v418 = vunpack.c.0.s8 %v417
        %v419 = vperm.slane %v415, %v418
        %v420 = vrot.slane %v408, 4
        %v421 = vsel %vm342, %v420, %v402
        %v422 = vrot.slane %v402, 4
        %v423 = vsel %vm342, %v408, %v422
        %v425 = vunpack.c.l.s4 1934713408
        %v426 = vunpack.c.0.s8 %v425
        %v427 = vperm.slane %v421, %v426
        %v429 = vunpack.c.l.s4 1934713408
        %v430 = vunpack.c.0.s8 %v429
        %v431 = vperm.slane %v423, %v430
        %v432 = vrot.slane %v419, 4
        %v433 = vsel %vm342, %v432, %v413
        %v434 = vrot.slane %v413, 4
        %v435 = vsel %vm342, %v419, %v434
        %v437 = vunpack.c.l.s4 1934713408
        %v438 = vunpack.c.0.s8 %v437
        %v439 = vperm.slane %v433, %v438
        %v441 = vunpack.c.l.s4 1934713408
        %v442 = vunpack.c.0.s8 %v441
        %v443 = vperm.slane %v435, %v442
        %v444 = vrot.slane %v439, 4
        %v445 = vsel %vm342, %v444, %v427
        %v446 = vrot.slane %v427, 4
        %v447 = vsel %vm342, %v439, %v446
        %v448 = vrot.slane %v443, 4
        %v449 = vsel %vm342, %v448, %v431
        %v450 = vrot.slane %v431, 4
        %v451 = vsel %vm342, %v443, %v450
        %vm452 = vcmask 64512
        %453 = vst.msk [vmem:[%s283] sm:$0xff] %vm452, %v445
        %454 = vst.msk [vmem:[%s283 + $0x8] sm:$0xff] %vm452, %v447
        %455 = vst.msk [vmem:[%s283 + $0x10] sm:$0xff] %vm452, %v449
        %456 = vst.msk [vmem:[%s283 + $0x18] sm:$0xff] %vm452, %v451
        %457 = vrot.lane.b32.xlu0 %v329, 96
        %v458 = vpop.permute.xlu0 %457
        %459 = vrot.lane.b32.xlu0 %v333, 96
        %v460 = vpop.permute.xlu0 %459
        %461 = vrot.lane.b32.xlu0 %v336, 96
        %v462 = vpop.permute.xlu0 %461
        %463 = vrot.lane.b32.xlu0 %v339, 96
        %v464 = vpop.permute.xlu0 %463
        %v469 = vrot.slane %v462, 4
        %v470 = vsel %vm342, %v469, %v458
        %v471 = vrot.slane %v458, 4
        %v472 = vsel %vm342, %v462, %v471
        %v474 = vunpack.c.l.s4 1983009808
        %v475 = vunpack.c.0.s8 %v474
        %v476 = vperm.slane %v470, %v475
        %v478 = vunpack.c.l.s4 1983009808
        %v479 = vunpack.c.0.s8 %v478
        %v480 = vperm.slane %v472, %v479
        %v481 = vrot.slane %v464, 4
        %v482 = vsel %vm342, %v481, %v460
        %v483 = vrot.slane %v460, 4
        %v484 = vsel %vm342, %v464, %v483
        %v486 = vunpack.c.l.s4 1983009808
        %v487 = vunpack.c.0.s8 %v486
        %v488 = vperm.slane %v482, %v487
        %v490 = vunpack.c.l.s4 1983009808
        %v491 = vunpack.c.0.s8 %v490
        %v492 = vperm.slane %v484, %v491
        %v493 = vrot.slane %v488, 4
        %v494 = vsel %vm342, %v493, %v476
        %v495 = vrot.slane %v476, 4
        %v496 = vsel %vm342, %v488, %v495
        %v498 = vunpack.c.l.s4 1934713408
        %v499 = vunpack.c.0.s8 %v498
        %v500 = vperm.slane %v494, %v499
        %v502 = vunpack.c.l.s4 1934713408
        %v503 = vunpack.c.0.s8 %v502
        %v504 = vperm.slane %v496, %v503
        %v505 = vrot.slane %v492, 4
        %v506 = vsel %vm342, %v505, %v480
        %v507 = vrot.slane %v480, 4
        %v508 = vsel %vm342, %v492, %v507
        %v510 = vunpack.c.l.s4 1934713408
        %v511 = vunpack.c.0.s8 %v510
        %v512 = vperm.slane %v506, %v511
        %v514 = vunpack.c.l.s4 1934713408
        %v515 = vunpack.c.0.s8 %v514
        %v516 = vperm.slane %v508, %v515
        %v517 = vrot.slane %v500, 4
        %v518 = vsel %vm342, 0.0, %v517
        %v519 = vrot.slane %v504, 4
        %v520 = vsel %vm342, 0.0, %v519
        %v521 = vrot.slane %v512, 4
        %v522 = vsel %vm342, 0.0, %v521
        %v523 = vrot.slane %v516, 4
        %v524 = vsel %vm342, 0.0, %v523
        %v525 = vsel %vm342, %v519, %v500
        %v527 = vunpack.c.l.s4 1983009808
        %v528 = vunpack.c.0.s8 %v527
        %v529 = vperm.slane %v525, %v528
        %v530 = vrot.slane %v520, 4
        %v531 = vsel %vm342, %v530, %v518
        %v533 = vunpack.c.l.s4 1983009808
        %v534 = vunpack.c.0.s8 %v533
        %v535 = vperm.slane %v531, %v534
        %v536 = vsel %vm342, %v523, %v512
        %v538 = vunpack.c.l.s4 1983009808
        %v539 = vunpack.c.0.s8 %v538
        %v540 = vperm.slane %v536, %v539
        %v541 = vrot.slane %v524, 4
        %v542 = vsel %vm342, %v541, %v522
        %v544 = vunpack.c.l.s4 1983009808
        %v545 = vunpack.c.0.s8 %v544
        %v546 = vperm.slane %v542, %v545
        %v547 = vrot.slane %v535, 4
        %v548 = vsel %vm342, %v547, %v529
        %v549 = vrot.slane %v529, 4
        %v550 = vsel %vm342, %v535, %v549
        %v552 = vunpack.c.l.s4 1934713408
        %v553 = vunpack.c.0.s8 %v552
        %v554 = vperm.slane %v548, %v553
        %v556 = vunpack.c.l.s4 1934713408
        %v557 = vunpack.c.0.s8 %v556
        %v558 = vperm.slane %v550, %v557
        %v559 = vrot.slane %v546, 4
        %v560 = vsel %vm342, %v559, %v540
        %v561 = vrot.slane %v540, 4
        %v562 = vsel %vm342, %v546, %v561
        %v564 = vunpack.c.l.s4 1934713408
        %v565 = vunpack.c.0.s8 %v564
        %v566 = vperm.slane %v560, %v565
        %v568 = vunpack.c.l.s4 1934713408
        %v569 = vunpack.c.0.s8 %v568
        %v570 = vperm.slane %v562, %v569
        %v571 = vrot.slane %v566, 4
        %v572 = vsel %vm342, %v571, %v554
        %v573 = vrot.slane %v554, 4
        %v574 = vsel %vm342, %v566, %v573
        %v575 = vrot.slane %v570, 4
        %v576 = vsel %vm342, %v575, %v558
        %v577 = vrot.slane %v558, 4
        %v578 = vsel %vm342, %v570, %v577
        %579 = vst.msk [vmem:[%s290] sm:$0xff] %vm452, %v572
        %580 = vst.msk [vmem:[%s290 + $0x8] sm:$0xff] %vm452, %v574
        %581 = vst.msk [vmem:[%s290 + $0x10] sm:$0xff] %vm452, %v576
        %582 = vst.msk [vmem:[%s290 + $0x18] sm:$0xff] %vm452, %v578
        %583 = vrot.lane.b32.xlu0 %v329, 64
        %v584 = vpop.permute.xlu0 %583
        %585 = vrot.lane.b32.xlu0 %v333, 64
        %v586 = vpop.permute.xlu0 %585
        %587 = vrot.lane.b32.xlu0 %v336, 64
        %v588 = vpop.permute.xlu0 %587
        %589 = vrot.lane.b32.xlu0 %v339, 64
        %v590 = vpop.permute.xlu0 %589
        %v595 = vrot.slane %v588, 4
        %v596 = vsel %vm342, %v595, %v584
        %v597 = vrot.slane %v584, 4
        %v598 = vsel %vm342, %v588, %v597
        %v600 = vunpack.c.l.s4 1983009808
        %v601 = vunpack.c.0.s8 %v600
        %v602 = vperm.slane %v596, %v601
        %v604 = vunpack.c.l.s4 1983009808
        %v605 = vunpack.c.0.s8 %v604
        %v606 = vperm.slane %v598, %v605
        %v607 = vrot.slane %v590, 4
        %v608 = vsel %vm342, %v607, %v586
        %v609 = vrot.slane %v586, 4
        %v610 = vsel %vm342, %v590, %v609
        %v612 = vunpack.c.l.s4 1983009808
        %v613 = vunpack.c.0.s8 %v612
        %v614 = vperm.slane %v608, %v613
        %v616 = vunpack.c.l.s4 1983009808
        %v617 = vunpack.c.0.s8 %v616
        %v618 = vperm.slane %v610, %v617
        %v619 = vrot.slane %v614, 4
        %v620 = vsel %vm342, %v619, %v602
        %v621 = vrot.slane %v602, 4
        %v622 = vsel %vm342, %v614, %v621
        %v624 = vunpack.c.l.s4 1934713408
        %v625 = vunpack.c.0.s8 %v624
        %v626 = vperm.slane %v620, %v625
        %v628 = vunpack.c.l.s4 1934713408
        %v629 = vunpack.c.0.s8 %v628
        %v630 = vperm.slane %v622, %v629
        %v631 = vrot.slane %v618, 4
        %v632 = vsel %vm342, %v631, %v606
        %v633 = vrot.slane %v606, 4
        %v634 = vsel %vm342, %v618, %v633
        %v636 = vunpack.c.l.s4 1934713408
        %v637 = vunpack.c.0.s8 %v636
        %v638 = vperm.slane %v632, %v637
        %v640 = vunpack.c.l.s4 1934713408
        %v641 = vunpack.c.0.s8 %v640
        %v642 = vperm.slane %v634, %v641
        %v643 = vrot.slane %v626, 4
        %v644 = vsel %vm342, 0.0, %v643
        %v645 = vrot.slane %v630, 4
        %v646 = vsel %vm342, 0.0, %v645
        %v647 = vrot.slane %v638, 4
        %v648 = vsel %vm342, 0.0, %v647
        %v649 = vrot.slane %v642, 4
        %v650 = vsel %vm342, 0.0, %v649
        %v651 = vsel %vm342, %v645, %v626
        %v653 = vunpack.c.l.s4 1983009808
        %v654 = vunpack.c.0.s8 %v653
        %v655 = vperm.slane %v651, %v654
        %v656 = vrot.slane %v646, 4
        %v657 = vsel %vm342, %v656, %v644
        %v659 = vunpack.c.l.s4 1983009808
        %v660 = vunpack.c.0.s8 %v659
        %v661 = vperm.slane %v657, %v660
        %v662 = vsel %vm342, %v649, %v638
        %v664 = vunpack.c.l.s4 1983009808
        %v665 = vunpack.c.0.s8 %v664
        %v666 = vperm.slane %v662, %v665
        %v667 = vrot.slane %v650, 4
        %v668 = vsel %vm342, %v667, %v648
        %v670 = vunpack.c.l.s4 1983009808
        %v671 = vunpack.c.0.s8 %v670
        %v672 = vperm.slane %v668, %v671
        %v673 = vrot.slane %v661, 4
        %v674 = vsel %vm342, %v673, %v655
        %v675 = vrot.slane %v655, 4
        %v676 = vsel %vm342, %v661, %v675
        %v678 = vunpack.c.l.s4 1934713408
        %v679 = vunpack.c.0.s8 %v678
        %v680 = vperm.slane %v674, %v679
        %v682 = vunpack.c.l.s4 1934713408
        %v683 = vunpack.c.0.s8 %v682
        %v684 = vperm.slane %v676, %v683
        %v685 = vrot.slane %v672, 4
        %v686 = vsel %vm342, %v685, %v666
        %v687 = vrot.slane %v666, 4
        %v688 = vsel %vm342, %v672, %v687
        %v690 = vunpack.c.l.s4 1934713408
        %v691 = vunpack.c.0.s8 %v690
        %v692 = vperm.slane %v686, %v691
        %v694 = vunpack.c.l.s4 1934713408
        %v695 = vunpack.c.0.s8 %v694
        %v696 = vperm.slane %v688, %v695
        %v697 = vrot.slane %v692, 4
        %v698 = vsel %vm342, %v697, %v680
        %v699 = vrot.slane %v680, 4
        %v700 = vsel %vm342, %v692, %v699
        %v701 = vrot.slane %v696, 4
        %v702 = vsel %vm342, %v701, %v684
        %v703 = vrot.slane %v684, 4
        %v704 = vsel %vm342, %v696, %v703
        %705 = vst.msk [vmem:[%s297] sm:$0xff] %vm452, %v698
        %706 = vst.msk [vmem:[%s297 + $0x8] sm:$0xff] %vm452, %v700
        %707 = vst.msk [vmem:[%s297 + $0x10] sm:$0xff] %vm452, %v702
        %708 = vst.msk [vmem:[%s297 + $0x18] sm:$0xff] %vm452, %v704
        %s709 = sand.u32 %s119, 1
        %s710 = scalar_lea.sflag [#allocation4], %s709
        %s711 = sand.u32 %s119, 1
        %s712 = smul.addr %s711, 32
        %s713 = scalar_lea.vmem [#allocation7], %s712
        %s714 = sand.u32 %s27, 1
        %s715 = scalar_lea.sflag [#allocation9], %s714
        %s716 = sand.u32 %s147, 1
        %s717 = smul.addr %s716, 32
        %s718 = scalar_lea.vmem [#allocation8], %s717
        %s719 = sand.u32 %s27, 1
        %s720 = scalar_lea.sflag [#allocation9], %s719
        %s721 = sand.u32 %s175, 1
        %s722 = smul.addr %s721, 32
        %s723 = scalar_lea.vmem [#allocation10], %s722
        // Predicated region
        $region41: #{tpu_custom_call.1} parent=31 // pred_check
          %p724 = pneg %p129
        $region42: #{tpu_custom_call.1} parent=31 // pred_check_branch
          %726 = sbr.rel (%p724) target = $region44
        $region43: #{tpu_custom_call.1} parent=31 // pred_region
          %728 = vsyncadd %s710, 0
          %s729 = smul.addr %s31, 4
          %s730 = sadd.s32 %s32, %s729
          %s731 = smul.addr %s730, 8
          %s732 = scalar_lea.hbm %s3, %s731
          %s733 = sshll.u32 %s713, 4
          %s734 = int_to_ptr.vmem [resolvable:$true] %s733
          %s735 = sshll.u32 %s732, 4
          %s736 = int_to_ptr.hbm [resolvable:$true] %s735
          %741 = dma.vmem_to_hbm [thread:$0]  %s734, 512, %s736, %s710, 128, 128, 8
        $region44: #{tpu_custom_call.1} parent=31 // pred_fallthru
          _
        // Predicated region
        $region45: #{tpu_custom_call.1} parent=31 // pred_check
          %p742 = pneg %p157
        $region46: #{tpu_custom_call.1} parent=31 // pred_check_branch
          %744 = sbr.rel (%p742) target = $region48
        $region47: #{tpu_custom_call.1} parent=31 // pred_region
          %746 = vsyncadd %s715, 0
          %s747 = smul.addr %s31, 4
          %s748 = sadd.s32 %s32, %s747
          %s749 = smul.addr %s748, 8
          %s750 = scalar_lea.hbm %s4, %s749
          %s751 = sshll.u32 %s718, 4
          %s752 = int_to_ptr.vmem [resolvable:$true] %s751
          %s753 = sshll.u32 %s750, 4
          %s754 = int_to_ptr.hbm [resolvable:$true] %s753
          %759 = dma.vmem_to_hbm [thread:$0]  %s752, 512, %s754, %s715, 128, 128, 8
        $region48: #{tpu_custom_call.1} parent=31 // pred_fallthru
          _
        // Predicated region
        $region49: #{tpu_custom_call.1} parent=31 // pred_check
          %p760 = pneg %p185
        $region50: #{tpu_custom_call.1} parent=31 // pred_check_branch
          %762 = sbr.rel (%p760) target = $region52
        $region51: #{tpu_custom_call.1} parent=31 // pred_region
          %764 = vsyncadd %s720, 0
          %s765 = smul.addr %s31, 4
          %s766 = sadd.s32 %s32, %s765
          %s767 = smul.addr %s766, 8
          %s768 = scalar_lea.hbm %s5, %s767
          %s769 = sshll.u32 %s723, 4
          %s770 = int_to_ptr.vmem [resolvable:$true] %s769
          %s771 = sshll.u32 %s768, 4
          %s772 = int_to_ptr.hbm [resolvable:$true] %s771
          %777 = dma.vmem_to_hbm [thread:$0]  %s770, 512, %s772, %s720, 128, 128, 8
        $region52: #{tpu_custom_call.1} parent=31 // pred_fallthru
          _
      $region32: #{tpu_custom_call.1} parent=5 // pred_fallthru
        _
      %p778 = scmp.le.s32.totalorder 2, %s22
      // Predicated region
      $region53: #{tpu_custom_call.1} parent=5 // pred_check
        %p779 = pneg %p778
      $region54: #{tpu_custom_call.1} parent=5 // pred_check_branch
        %781 = sbr.rel (%p779) target = $region56
      $region55: #{tpu_custom_call.1} parent=5 // pred_region
        %s782 = ssub.s32 %s22, 2
        // Predicated region
        $region57: #{tpu_custom_call.1} parent=55 // pred_check
          %p783 = pneg %p135
        $region58: #{tpu_custom_call.1} parent=55 // pred_check_branch
          %785 = sbr.rel (%p783) target = $region60
        $region59: #{tpu_custom_call.1} parent=55 // pred_region
          %s786 = sand.u32 %s120, 1
          %s787 = scalar_lea.sflag [#allocation4], %s786
          %s788 = sand.u32 %s120, 1
          %s789 = smul.addr %s788, 32
          %s790 = scalar_lea.vmem [#allocation7], %s789
          %792 = dma.done %s787, 512
        $region60: #{tpu_custom_call.1} parent=55 // pred_fallthru
          _
        // Predicated region
        $region61: #{tpu_custom_call.1} parent=55 // pred_check
          %p793 = pneg %p163
        $region62: #{tpu_custom_call.1} parent=55 // pred_check_branch
          %795 = sbr.rel (%p793) target = $region64
        $region63: #{tpu_custom_call.1} parent=55 // pred_region
          %s796 = sand.u32 %s28, 1
          %s797 = scalar_lea.sflag [#allocation9], %s796
          %s798 = sand.u32 %s148, 1
          %s799 = smul.addr %s798, 32
          %s800 = scalar_lea.vmem [#allocation8], %s799
          %802 = dma.done %s797, 512
        $region64: #{tpu_custom_call.1} parent=55 // pred_fallthru
          _
        // Predicated region
        $region65: #{tpu_custom_call.1} parent=55 // pred_check
          %p803 = pneg %p191
        $region66: #{tpu_custom_call.1} parent=55 // pred_check_branch
          %805 = sbr.rel (%p803) target = $region68
        $region67: #{tpu_custom_call.1} parent=55 // pred_region
          %s806 = sand.u32 %s28, 1
          %s807 = scalar_lea.sflag [#allocation9], %s806
          %s808 = sand.u32 %s176, 1
          %s809 = smul.addr %s808, 32
          %s810 = scalar_lea.vmem [#allocation10], %s809
          %812 = dma.done %s807, 512
        $region68: #{tpu_custom_call.1} parent=55 // pred_fallthru
          _
      $region56: #{tpu_custom_call.1} parent=5 // pred_fallthru
        _
    $region6: #{tpu_custom_call.1} parent=1 // loop_footer
      %s26 = sadd.s32 1, %s22
    $region7: #{tpu_custom_call.1} parent=1 // loop_footer_branch
      %21 = sbr.rel target = $region3
    $region8: #{tpu_custom_call.1} parent=1 // loop_exit
      _
    %813 = vsyncpa [#allocation3], 1
    %s814 = scalar_lea.sflag [#allocation3], 1
    %815 = vsyncpa %s814, 1
    %816 = vsyncpa [#allocation6], 1
    %817 = vsyncpa [#allocation4], 1
    %s818 = scalar_lea.sflag [#allocation4], 1
    %819 = vsyncpa %s818, 1
    %820 = vsyncpa [#allocation9], 1
    %s821 = scalar_lea.sflag [#allocation9], 1
    %822 = vsyncpa %s821, 1

// kernel: tpu_custom_call.1
$region0: #{tpu_custom_call.1}
  #allocation0 [shape = 'u32[]', space=smem, size = 0x4, offset = 0x4, fixed_abs, tag = 'smem constant byte address 0x4 - core index']
  #allocation1 [shape = 'u32[72,128]{1,0:T(1,128)}', space=vmem, size = 0x9000, scoped, tag = 'internal scratch']
  %s0 = inlined_call_operand.hbm [shape: f32[2,8,32], index: 0, kind: input, shape index: {}]
  %s1 = inlined_call_operand.hbm [shape: f32[32,96], index: 1, kind: input, shape index: {}]
  %s2 = inlined_call_operand.vmem [shape: f32[1,96], index: 2, kind: input, shape index: {}]
  %s3 = inlined_call_operand.hbm [shape: f32[2,4,8,8], index: 3, kind: output, shape index: {0}]
  %s4 = inlined_call_operand.hbm [shape: f32[2,4,8,8], index: 4, kind: output, shape index: {1}]
  %s5 = inlined_call_operand.hbm [shape: f32[2,4,8,8], index: 5, kind: output, shape index: {2}]
  %6 = xla_tuple %s3, %s4, %s5
  %s7 = sld [smem:[#allocation0]]
  $region69: #{tpu_custom_call.1} parent=0
    _
  %s9 = ssub.s32 1, %s7
  %s10 = scalar_select 0, %s9, %s7
  $region1: #{tpu_custom_call.1} parent=0
    #allocation2 [shape = 'u8[8192]{0}', space=vmem, size = 0x2000, scoped, tag = 'input window, operand 0']
    #allocation3 [shape = 's32[2]{0}', space=sflag, size = 0x8, scoped, tag = 'scoped memory for tpu_custom_call.1']
    #allocation4 [shape = 's32[2]{0}', space=sflag, size = 0x8, scoped, tag = 'scoped memory for tpu_custom_call.1']
    #allocation5 [shape = 'u8[16384]{0}', space=vmem, size = 0x4000, scoped, tag = 'input window, operand 1, single buffered']
    #allocation6 [shape = 's32[1]{0}', space=sflag, size = 0x4, scoped, tag = 'scoped memory for tpu_custom_call.1']
    #allocation7 [shape = 'u8[32768]{0}', space=vmem, size = 0x8000, scoped, tag = 'output window, operand 0']
    #allocation8 [shape = 'u8[32768]{0}', space=vmem, size = 0x8000, scoped, tag = 'output window, operand 1']
    #allocation9 [shape = 's32[2]{0}', space=sflag, size = 0x8, scoped, tag = 'scoped memory for tpu_custom_call.1']
    #allocation10 [shape = 'u8[32768]{0}', space=vmem, size = 0x8000, scoped, tag = 'output window, operand 2']
    %11 = vsyncpa [#allocation3], 0
    %s12 = scalar_lea.sflag [#allocation3], 1
    %13 = vsyncpa %s12, 0
    %14 = vsyncpa [#allocation6], 0
    %15 = vsyncpa [#allocation4], 0
    %s16 = scalar_lea.sflag [#allocation4], 1
    %17 = vsyncpa %s16, 0
    %18 = vsyncpa [#allocation9], 0
    %s19 = scalar_lea.sflag [#allocation9], 1
    %20 = vsyncpa %s19, 0
    loop: start=0, step=1, limit=4
    $region2: #{tpu_custom_call.1} parent=1 // loop_pre_header
      _
    $region3: #{tpu_custom_call.1} parent=1 // loop_header
      %s22 = sphi 0, %s26
      %p23 = scmp.ge.s32.totalorder %s22, 4
      %s29 = sphi 0, %s41
      %s30 = sphi 0, %s37
      %s31 = sphi 0, %s29
      %s32 = sphi 0, %s30
      %s33 = sphi 0, %s31
      %s34 = sphi 0, %s32
      %s46 = sphi 0, %s48
      %s49 = sphi 0, %s46
      %s50 = sphi 0, %s49
      %s66 = sphi 0, %s50
      %s70 = sphi 0, %s70
      %s72 = sphi 0, %s70
      %s73 = sphi 0, %s72
      %s87 = sphi 0, %s73
      %s91 = sphi 0, %s91
      %s93 = sphi 0, %s91
      %s94 = sphi 0, %s93
      %s108 = sphi 0, %s94
      %s116 = sphi 0, %s118
      %s119 = sphi 0, %s116
      %s120 = sphi 0, %s119
      %s136 = sphi 0, %s120
      %s144 = sphi 0, %s146
      %s147 = sphi 0, %s144
      %s148 = sphi 0, %s147
      %s164 = sphi 0, %s148
      %s172 = sphi 0, %s174
      %s175 = sphi 0, %s172
      %s176 = sphi 0, %s175
      %s192 = sphi 0, %s176
    $region4: #{tpu_custom_call.1} parent=1 // loop_header_branch
      %25 = sbr.rel (%p23) target = $region8
    $region5: #{tpu_custom_call.1} parent=1 // loop_body
      %s27 = ssub.s32 %s22, 1
      %s28 = ssub.s32 %s22, 2
      %s35 = sadd.s32 1, %s30
      %p36 = scmp.ge.s32.totalorder %s35, 1
      %s37 = scalar_select %p36, 0, %s35
      %s38 = sadd.s32 1, %s29
      %s39 = scalar_select %p36, %s38, %s29
      %p40 = scmp.ge.s32.totalorder %s39, 2
      %s41 = scalar_select %p40, 0, %s39
      %s42 = ssub.s32 %s29, %s41
      %s43 = ssub.s32 %s30, %s37
      %s44 = sor.u32 %s42, %s43
      %p45 = scmp.eq.s32.totalorder %s44, 0
      %s47 = sadd.s32 %s46, 1
      %s48 = scalar_select %p45, %s46, %s47
      %p51 = pneg %p45
      %p52 = scmp.eq.s32.totalorder %s22, 1
      %p53 = por %p51, %p52
      %p54 = scmp.ne.s32.totalorder %s46, %s49
      %p55 = scmp.eq.s32.totalorder %s22, 0
      %p56 = por %p54, %p55
      %p57 = scmp.ne.s32.totalorder %s46, %s49
      %p58 = scmp.eq.s32.totalorder %s27, 1
      %p59 = por %p57, %p58
      %p60 = scmp.ne.s32.totalorder %s49, %s50
      %p61 = scmp.eq.s32.totalorder %s27, 0
      %p62 = por %p60, %p61
      %p63 = scmp.ne.s32.totalorder %s49, %s50
      %p64 = scmp.eq.s32.totalorder %s28, 1
      %p65 = por %p63, %p64
      %p67 = scmp.ne.s32.totalorder %s50, %s66
      %p68 = scmp.eq.s32.totalorder %s28, 0
      %p69 = por %p67, %p68
      %s71 = sadd.s32 %s70, 1
      %p74 = scmp.eq.s32.totalorder %s22, 1
      %p75 = scmp.ne.s32.totalorder %s70, %s72
      %p76 = scmp.eq.s32.totalorder %s22, 0
      %p77 = por %p75, %p76
      %p78 = scmp.ne.s32.totalorder %s70, %s72
      %p79 = scmp.eq.s32.totalorder %s27, 1
      %p80 = por %p78, %p79
      %p81 = scmp.ne.s32.totalorder %s72, %s73
      %p82 = scmp.eq.s32.totalorder %s27, 0
      %p83 = por %p81, %p82
      %p84 = scmp.ne.s32.totalorder %s72, %s73
      %p85 = scmp.eq.s32.totalorder %s28, 1
      %p86 = por %p84, %p85
      %p88 = scmp.ne.s32.totalorder %s73, %s87
      %p89 = scmp.eq.s32.totalorder %s28, 0
      %p90 = por %p88, %p89
      %s92 = sadd.s32 %s91, 1
      %p95 = scmp.eq.s32.totalorder %s22, 1
      %p96 = scmp.ne.s32.totalorder %s91, %s93
      %p97 = scmp.eq.s32.totalorder %s22, 0
      %p98 = por %p96, %p97
      %p99 = scmp.ne.s32.totalorder %s91, %s93
      %p100 = scmp.eq.s32.totalorder %s27, 1
      %p101 = por %p99, %p100
      %p102 = scmp.ne.s32.totalorder %s93, %s94
      %p103 = scmp.eq.s32.totalorder %s27, 0
      %p104 = por %p102, %p103
      %p105 = scmp.ne.s32.totalorder %s93, %s94
      %p106 = scmp.eq.s32.totalorder %s28, 1
      %p107 = por %p105, %p106
      %p109 = scmp.ne.s32.totalorder %s94, %s108
      %p110 = scmp.eq.s32.totalorder %s28, 0
      %p111 = por %p109, %p110
      %s112 = ssub.s32 %s29, %s41
      %s113 = ssub.s32 %s30, %s37
      %s114 = sor.u32 %s112, %s113
      %p115 = scmp.eq.s32.totalorder %s114, 0
      %s117 = sadd.s32 %s116, 1
      %s118 = scalar_select %p115, %s116, %s117
      %p121 = pneg %p115
      %p122 = scmp.eq.s32.totalorder %s22, 1
      %p123 = por %p121, %p122
      %p124 = scmp.ne.s32.totalorder %s116, %s119
      %p125 = scmp.eq.s32.totalorder %s22, 0
      %p126 = por %p124, %p125
      %p127 = scmp.ne.s32.totalorder %s116, %s119
      %p128 = scmp.eq.s32.totalorder %s27, 1
      %p129 = por %p127, %p128
      %p130 = scmp.ne.s32.totalorder %s119, %s120
      %p131 = scmp.eq.s32.totalorder %s27, 0
      %p132 = por %p130, %p131
      %p133 = scmp.ne.s32.totalorder %s119, %s120
      %p134 = scmp.eq.s32.totalorder %s28, 1
      %p135 = por %p133, %p134
      %p137 = scmp.ne.s32.totalorder %s120, %s136
      %p138 = scmp.eq.s32.totalorder %s28, 0
      %p139 = por %p137, %p138
      %s140 = ssub.s32 %s29, %s41
      %s141 = ssub.s32 %s30, %s37
      %s142 = sor.u32 %s140, %s141
      %p143 = scmp.eq.s32.totalorder %s142, 0
      %s145 = sadd.s32 %s144, 1
      %s146 = scalar_select %p143, %s144, %s145
      %p149 = pneg %p143
      %p150 = scmp.eq.s32.totalorder %s22, 1
      %p151 = por %p149, %p150
      %p152 = scmp.ne.s32.totalorder %s144, %s147
      %p153 = scmp.eq.s32.totalorder %s22, 0
      %p154 = por %p152, %p153
      %p155 = scmp.ne.s32.totalorder %s144, %s147
      %p156 = scmp.eq.s32.totalorder %s27, 1
      %p157 = por %p155, %p156
      %p158 = scmp.ne.s32.totalorder %s147, %s148
      %p159 = scmp.eq.s32.totalorder %s27, 0
      %p160 = por %p158, %p159
      %p161 = scmp.ne.s32.totalorder %s147, %s148
      %p162 = scmp.eq.s32.totalorder %s28, 1
      %p163 = por %p161, %p162
      %p165 = scmp.ne.s32.totalorder %s148, %s164
      %p166 = scmp.eq.s32.totalorder %s28, 0
      %p167 = por %p165, %p166
      %s168 = ssub.s32 %s29, %s41
      %s169 = ssub.s32 %s30, %s37
      %s170 = sor.u32 %s168, %s169
      %p171 = scmp.eq.s32.totalorder %s170, 0
      %s173 = sadd.s32 %s172, 1
      %s174 = scalar_select %p171, %s172, %s173
      %p177 = pneg %p171
      %p178 = scmp.eq.s32.totalorder %s22, 1
      %p179 = por %p177, %p178
      %p180 = scmp.ne.s32.totalorder %s172, %s175
      %p181 = scmp.eq.s32.totalorder %s22, 0
      %p182 = por %p180, %p181
      %p183 = scmp.ne.s32.totalorder %s172, %s175
      %p184 = scmp.eq.s32.totalorder %s27, 1
      %p185 = por %p183, %p184
      %p186 = scmp.ne.s32.totalorder %s175, %s176
      %p187 = scmp.eq.s32.totalorder %s27, 0
      %p188 = por %p186, %p187
      %p189 = scmp.ne.s32.totalorder %s175, %s176
      %p190 = scmp.eq.s32.totalorder %s28, 1
      %p191 = por %p189, %p190
      %p193 = scmp.ne.s32.totalorder %s176, %s192
      %p194 = scmp.eq.s32.totalorder %s28, 0
      %p195 = por %p193, %p194
      %p196 = scmp.le.s32.totalorder 1, %s22
      %p197 = scmp.lt.s32.totalorder %s22, 3
      %p198 = pnand %p196, %p197
      %p199 = pneg %p198
      // Predicated region
      $region9: #{tpu_custom_call.1} parent=5 // pred_check
        _
      $region10: #{tpu_custom_call.1} parent=5 // pred_check_branch
        %201 = sbr.rel (%p198) target = $region12
      $region11: #{tpu_custom_call.1} parent=5 // pred_region
        %s202 = ssub.s32 %s22, 1
        // Predicated region
        $region13: #{tpu_custom_call.1} parent=11 // pred_check
          %p203 = pneg %p83
        $region14: #{tpu_custom_call.1} parent=11 // pred_check_branch
          %205 = sbr.rel (%p203) target = $region16
        $region15: #{tpu_custom_call.1} parent=11 // pred_region
          %207 = vsyncadd [#allocation6], 0
          %s208 = sshll.u32 %s1, 4
          %s209 = int_to_ptr.hbm [resolvable:$true] %s208
          %s210 = sshll.u32 [#allocation5], 4
          %s211 = int_to_ptr.vmem [resolvable:$true] %s210
          %216 = dma.hbm_to_vmem [thread:$0]  %s209, 512, %s211, [#allocation6], 128, 128, 8
        $region16: #{tpu_custom_call.1} parent=11 // pred_fallthru
          _
        // Predicated region
        $region17: #{tpu_custom_call.1} parent=11 // pred_check
          %p217 = pneg %p104
        $region18: #{tpu_custom_call.1} parent=11 // pred_check_branch
          %219 = sbr.rel (%p217) target = $region20
        $region19: #{tpu_custom_call.1} parent=11 // pred_region
          _
        $region20: #{tpu_custom_call.1} parent=11 // pred_fallthru
          _
      $region12: #{tpu_custom_call.1} parent=5 // pred_fallthru
        _
      %p220 = scmp.lt.s32.totalorder %s22, 2
      // Predicated region
      $region21: #{tpu_custom_call.1} parent=5 // pred_check
        %p221 = pneg %p220
      $region22: #{tpu_custom_call.1} parent=5 // pred_check_branch
        %223 = sbr.rel (%p221) target = $region24
      $region23: #{tpu_custom_call.1} parent=5 // pred_region
        // Predicated region
        $region25: #{tpu_custom_call.1} parent=23 // pred_check
          %p224 = pneg %p56
        $region26: #{tpu_custom_call.1} parent=23 // pred_check_branch
          %226 = sbr.rel (%p224) target = $region28
        $region27: #{tpu_custom_call.1} parent=23 // pred_region
          %s227 = sand.u32 %s46, 1
          %s228 = scalar_lea.sflag [#allocation3], %s227
          %s229 = sand.u32 %s46, 1
          %s230 = smul.addr %s229, 8
          %s231 = scalar_lea.vmem [#allocation2], %s230
          %233 = vsyncadd %s228, 0
          %s234 = sadd.s32 %s30, %s29
          %s235 = smul.addr %s234, 8
          %s236 = scalar_lea.hbm %s0, %s235
          %s238 = sshll.u32 %s236, 4
          %s239 = int_to_ptr.hbm [resolvable:$true] %s238
          %s240 = sshll.u32 %s231, 4
          %s241 = int_to_ptr.vmem [resolvable:$true] %s240
          %243 = dma.hbm_to_vmem [thread:$0]  %s239, 128, %s241, %s228
        $region28: #{tpu_custom_call.1} parent=23 // pred_fallthru
          _
      $region24: #{tpu_custom_call.1} parent=5 // pred_fallthru
        _
      %p244 = scmp.le.s32.totalorder 1, %s22
      %p245 = scmp.lt.s32.totalorder %s22, 3
      %p246 = pnand %p244, %p245
      %p247 = pneg %p246
      // Predicated region
      $region29: #{tpu_custom_call.1} parent=5 // pred_check
        _
      $region30: #{tpu_custom_call.1} parent=5 // pred_check_branch
        %249 = sbr.rel (%p246) target = $region32
      $region31: #{tpu_custom_call.1} parent=5 // pred_region
        %s250 = ssub.s32 %s22, 1
        %s251 = sand.u32 %s49, 1
        %s252 = scalar_lea.sflag [#allocation3], %s251
        %s253 = sand.u32 %s49, 1
        %s254 = smul.addr %s253, 8
        %s255 = scalar_lea.vmem [#allocation2], %s254
        // Predicated region
        $region33: #{tpu_custom_call.1} parent=31 // pred_check
          %p256 = pneg %p62
        $region34: #{tpu_custom_call.1} parent=31 // pred_check_branch
          %258 = sbr.rel (%p256) target = $region36
        $region35: #{tpu_custom_call.1} parent=31 // pred_region
          %260 = dma.done %s252, 128
        $region36: #{tpu_custom_call.1} parent=31 // pred_fallthru
          _
        // Predicated region
        $region37: #{tpu_custom_call.1} parent=31 // pred_check
          %p261 = pneg %p83
        $region38: #{tpu_custom_call.1} parent=31 // pred_check_branch
          %263 = sbr.rel (%p261) target = $region40
        $region39: #{tpu_custom_call.1} parent=31 // pred_region
          %265 = dma.done [#allocation6], 512
        $region40: #{tpu_custom_call.1} parent=31 // pred_fallthru
          _
        %s266 = sand.u32 %s49, 1
        %s267 = scalar_lea.sflag [#allocation3], %s266
        %s268 = sand.u32 %s49, 1
        %s269 = smul.addr %s268, 8
        %s270 = scalar_lea.vmem [#allocation2], %s269
        %p271 = pneg %p62
        %p272 = pneg %p59
        %p273 = pneg %p83
        %p274 = pneg %p80
        %p275 = pneg %p104
        %p276 = pneg %p101
        %p277 = pneg %p132
        %p278 = pneg %p129
        %s279 = sand.u32 %s119, 1
        %s280 = scalar_lea.sflag [#allocation4], %s279
        %s281 = sand.u32 %s119, 1
        %s282 = smul.addr %s281, 32
        %s283 = scalar_lea.vmem [#allocation7], %s282
        %p284 = pneg %p160
        %p285 = pneg %p157
        %s286 = sand.u32 %s27, 1
        %s287 = scalar_lea.sflag [#allocation9], %s286
        %s288 = sand.u32 %s147, 1
        %s289 = smul.addr %s288, 32
        %s290 = scalar_lea.vmem [#allocation8], %s289
        %p291 = pneg %p188
        %p292 = pneg %p185
        %s293 = sand.u32 %s27, 1
        %s294 = scalar_lea.sflag [#allocation9], %s293
        %s295 = sand.u32 %s175, 1
        %s296 = smul.addr %s295, 32
        %s297 = scalar_lea.vmem [#allocation10], %s296
        %v298 = vld [vmem:[%s255] sm:$0xff]
        %v299 = vld [vmem:[#allocation5] sm:$0xff]
        %v300 = vld [vmem:[#allocation5 + $0x8] sm:$0xff]
        %v301 = vld [vmem:[#allocation5 + $0x10] sm:$0xff]
        %v302 = vld [vmem:[#allocation5 + $0x18] sm:$0xff]
        %v303 = vld [vmem:[%s2] sm:$0x1]
        %v305 = vperm.slane %v303, 0
        %vm307 = vcmask 261120
        %v309 = vsel %vm307, %v298, 0
        %311 = vmatpush.msra.mxu0 0.0
        %312 = vmatpush.msra.mxu0 0.0
        %313 = vmatpush.msra.mxu0 0.0
        %314 = vmatpush.msra.mxu0 0.0
        %315 = vmatpush.msra.mxu0 0.0
        %316 = vmatpush.msra.mxu0 0.0
        %317 = vmatpush.msra.mxu0 0.0
        %318 = vmatpush.msra.mxu0 0.0
        %319 = vmatpush.msra.mxu0 0.0
        %320 = vmatpush.msra.mxu0 0.0
        %321 = vmatpush.msra.mxu0 0.0
        %322 = vmatpush.msra.mxu0 0.0
        %323 = vmatpush.msra.mxu0 %v302
        %324 = vmatpush.msra.mxu0 %v301
        %325 = vmatpush.msra.mxu0 %v300
        %326 = vmatpush.msra.mxu0 %v299
        %327 = vmatmul.f32.gmra.mxu0 %v309
        %v328 = vpop.f32.mrf.mxu0
        %v329 = vadd.f32 %v305, %v328
        %330 = vdwg.mxu0
        %332 = vrot.lane.b32.xlu0 %v329, 120
        %v333 = vpop.permute.xlu0 %332
        %335 = vrot.lane.b32.xlu0 %v329, 112
        %v336 = vpop.permute.xlu0 %335
        %338 = vrot.lane.b32.xlu0 %v329, 104
        %v339 = vpop.permute.xlu0 %338
        %v341 = vrot.slane %v336, 4
        %vm342 = vcmask 1047556
        %v343 = vsel %vm342, %v341, %v329
        %v344 = vrot.slane %v329, 4
        %v345 = vsel %vm342, %v336, %v344
        %v347 = vunpack.c.l.s4 1983009808
        %v348 = vunpack.c.0.s8 %v347
        %v349 = vperm.slane %v343, %v348
        %v351 = vunpack.c.l.s4 1983009808
        %v352 = vunpack.c.0.s8 %v351
        %v353 = vperm.slane %v345, %v352
        %v354 = vrot.slane %v339, 4
        %v355 = vsel %vm342, %v354, %v333
        %v356 = vrot.slane %v333, 4
        %v357 = vsel %vm342, %v339, %v356
        %v359 = vunpack.c.l.s4 1983009808
        %v360 = vunpack.c.0.s8 %v359
        %v361 = vperm.slane %v355, %v360
        %v363 = vunpack.c.l.s4 1983009808
        %v364 = vunpack.c.0.s8 %v363
        %v365 = vperm.slane %v357, %v364
        %v366 = vrot.slane %v361, 4
        %v367 = vsel %vm342, %v366, %v349
        %v368 = vrot.slane %v349, 4
        %v369 = vsel %vm342, %v361, %v368
        %v371 = vunpack.c.l.s4 1934713408
        %v372 = vunpack.c.0.s8 %v371
        %v373 = vperm.slane %v367, %v372
        %v375 = vunpack.c.l.s4 1934713408
        %v376 = vunpack.c.0.s8 %v375
        %v377 = vperm.slane %v369, %v376
        %v378 = vrot.slane %v365, 4
        %v379 = vsel %vm342, %v378, %v353
        %v380 = vrot.slane %v353, 4
        %v381 = vsel %vm342, %v365, %v380
        %v383 = vunpack.c.l.s4 1934713408
        %v384 = vunpack.c.0.s8 %v383
        %v385 = vperm.slane %v379, %v384
        %v387 = vunpack.c.l.s4 1934713408
        %v388 = vunpack.c.0.s8 %v387
        %v389 = vperm.slane %v381, %v388
        %v390 = vrot.slane %v373, 4
        %v391 = vsel %vm342, 0.0, %v390
        %v392 = vrot.slane %v377, 4
        %v393 = vsel %vm342, 0.0, %v392
        %v394 = vrot.slane %v385, 4
        %v395 = vsel %vm342, 0.0, %v394
        %v396 = vrot.slane %v389, 4
        %v397 = vsel %vm342, 0.0, %v396
        %v398 = vsel %vm342, %v392, %v373
        %v400 = vunpack.c.l.s4 1983009808
        %v401 = vunpack.c.0.s8 %v400
        %v402 = vperm.slane %v398, %v401
        %v403 = vrot.slane %v393, 4
        %v404 = vsel %vm342, %v403, %v391
        %v406 = vunpack.c.l.s4 1983009808
        %v407 = vunpack.c.0.s8 %v406
        %v408 = vperm.slane %v404, %v407
        %v409 = vsel %vm342, %v396, %v385
        %v411 = vunpack.c.l.s4 1983009808
        %v412 = vunpack.c.0.s8 %v411
        %v413 = vperm.slane %v409, %v412
        %v414 = vrot.slane %v397, 4
        %v415 = vsel %vm342, %v414, %v395
        %v417 = vunpack.c.l.s4 1983009808
        %v418 = vunpack.c.0.s8 %v417
        %v419 = vperm.slane %v415, %v418
        %v420 = vrot.slane %v408, 4
        %v421 = vsel %vm342, %v420, %v402
        %v422 = vrot.slane %v402, 4
        %v423 = vsel %vm342, %v408, %v422
        %v425 = vunpack.c.l.s4 1934713408
        %v426 = vunpack.c.0.s8 %v425
        %v427 = vperm.slane %v421, %v426
        %v429 = vunpack.c.l.s4 1934713408
        %v430 = vunpack.c.0.s8 %v429
        %v431 = vperm.slane %v423, %v430
        %v432 = vrot.slane %v419, 4
        %v433 = vsel %vm342, %v432, %v413
        %v434 = vrot.slane %v413, 4
        %v435 = vsel %vm342, %v419, %v434
        %v437 = vunpack.c.l.s4 1934713408
        %v438 = vunpack.c.0.s8 %v437
        %v439 = vperm.slane %v433, %v438
        %v441 = vunpack.c.l.s4 1934713408
        %v442 = vunpack.c.0.s8 %v441
        %v443 = vperm.slane %v435, %v442
        %v444 = vrot.slane %v439, 4
        %v445 = vsel %vm342, %v444, %v427
        %v446 = vrot.slane %v427, 4
        %v447 = vsel %vm342, %v439, %v446
        %v448 = vrot.slane %v443, 4
        %v449 = vsel %vm342, %v448, %v431
        %v450 = vrot.slane %v431, 4
        %v451 = vsel %vm342, %v443, %v450
        %vm452 = vcmask 64512
        %453 = vst.msk [vmem:[%s283] sm:$0xff] %vm452, %v445
        %454 = vst.msk [vmem:[%s283 + $0x8] sm:$0xff] %vm452, %v447
        %455 = vst.msk [vmem:[%s283 + $0x10] sm:$0xff] %vm452, %v449
        %456 = vst.msk [vmem:[%s283 + $0x18] sm:$0xff] %vm452, %v451
        %457 = vrot.lane.b32.xlu0 %v329, 96
        %v458 = vpop.permute.xlu0 %457
        %459 = vrot.lane.b32.xlu0 %v333, 96
        %v460 = vpop.permute.xlu0 %459
        %461 = vrot.lane.b32.xlu0 %v336, 96
        %v462 = vpop.permute.xlu0 %461
        %463 = vrot.lane.b32.xlu0 %v339, 96
        %v464 = vpop.permute.xlu0 %463
        %v469 = vrot.slane %v462, 4
        %v470 = vsel %vm342, %v469, %v458
        %v471 = vrot.slane %v458, 4
        %v472 = vsel %vm342, %v462, %v471
        %v474 = vunpack.c.l.s4 1983009808
        %v475 = vunpack.c.0.s8 %v474
        %v476 = vperm.slane %v470, %v475
        %v478 = vunpack.c.l.s4 1983009808
        %v479 = vunpack.c.0.s8 %v478
        %v480 = vperm.slane %v472, %v479
        %v481 = vrot.slane %v464, 4
        %v482 = vsel %vm342, %v481, %v460
        %v483 = vrot.slane %v460, 4
        %v484 = vsel %vm342, %v464, %v483
        %v486 = vunpack.c.l.s4 1983009808
        %v487 = vunpack.c.0.s8 %v486
        %v488 = vperm.slane %v482, %v487
        %v490 = vunpack.c.l.s4 1983009808
        %v491 = vunpack.c.0.s8 %v490
        %v492 = vperm.slane %v484, %v491
        %v493 = vrot.slane %v488, 4
        %v494 = vsel %vm342, %v493, %v476
        %v495 = vrot.slane %v476, 4
        %v496 = vsel %vm342, %v488, %v495
        %v498 = vunpack.c.l.s4 1934713408
        %v499 = vunpack.c.0.s8 %v498
        %v500 = vperm.slane %v494, %v499
        %v502 = vunpack.c.l.s4 1934713408
        %v503 = vunpack.c.0.s8 %v502
        %v504 = vperm.slane %v496, %v503
        %v505 = vrot.slane %v492, 4
        %v506 = vsel %vm342, %v505, %v480
        %v507 = vrot.slane %v480, 4
        %v508 = vsel %vm342, %v492, %v507
        %v510 = vunpack.c.l.s4 1934713408
        %v511 = vunpack.c.0.s8 %v510
        %v512 = vperm.slane %v506, %v511
        %v514 = vunpack.c.l.s4 1934713408
        %v515 = vunpack.c.0.s8 %v514
        %v516 = vperm.slane %v508, %v515
        %v517 = vrot.slane %v500, 4
        %v518 = vsel %vm342, 0.0, %v517
        %v519 = vrot.slane %v504, 4
        %v520 = vsel %vm342, 0.0, %v519
        %v521 = vrot.slane %v512, 4
        %v522 = vsel %vm342, 0.0, %v521
        %v523 = vrot.slane %v516, 4
        %v524 = vsel %vm342, 0.0, %v523
        %v525 = vsel %vm342, %v519, %v500
        %v527 = vunpack.c.l.s4 1983009808
        %v528 = vunpack.c.0.s8 %v527
        %v529 = vperm.slane %v525, %v528
        %v530 = vrot.slane %v520, 4
        %v531 = vsel %vm342, %v530, %v518
        %v533 = vunpack.c.l.s4 1983009808
        %v534 = vunpack.c.0.s8 %v533
        %v535 = vperm.slane %v531, %v534
        %v536 = vsel %vm342, %v523, %v512
        %v538 = vunpack.c.l.s4 1983009808
        %v539 = vunpack.c.0.s8 %v538
        %v540 = vperm.slane %v536, %v539
        %v541 = vrot.slane %v524, 4
        %v542 = vsel %vm342, %v541, %v522
        %v544 = vunpack.c.l.s4 1983009808
        %v545 = vunpack.c.0.s8 %v544
        %v546 = vperm.slane %v542, %v545
        %v547 = vrot.slane %v535, 4
        %v548 = vsel %vm342, %v547, %v529
        %v549 = vrot.slane %v529, 4
        %v550 = vsel %vm342, %v535, %v549
        %v552 = vunpack.c.l.s4 1934713408
        %v553 = vunpack.c.0.s8 %v552
        %v554 = vperm.slane %v548, %v553
        %v556 = vunpack.c.l.s4 1934713408
        %v557 = vunpack.c.0.s8 %v556
        %v558 = vperm.slane %v550, %v557
        %v559 = vrot.slane %v546, 4
        %v560 = vsel %vm342, %v559, %v540
        %v561 = vrot.slane %v540, 4
        %v562 = vsel %vm342, %v546, %v561
        %v564 = vunpack.c.l.s4 1934713408
        %v565 = vunpack.c.0.s8 %v564
        %v566 = vperm.slane %v560, %v565
        %v568 = vunpack.c.l.s4 1934713408
        %v569 = vunpack.c.0.s8 %v568
        %v570 = vperm.slane %v562, %v569
        %v571 = vrot.slane %v566, 4
        %v572 = vsel %vm342, %v571, %v554
        %v573 = vrot.slane %v554, 4
        %v574 = vsel %vm342, %v566, %v573
        %v575 = vrot.slane %v570, 4
        %v576 = vsel %vm342, %v575, %v558
        %v577 = vrot.slane %v558, 4
        %v578 = vsel %vm342, %v570, %v577
        %579 = vst.msk [vmem:[%s290] sm:$0xff] %vm452, %v572
        %580 = vst.msk [vmem:[%s290 + $0x8] sm:$0xff] %vm452, %v574
        %581 = vst.msk [vmem:[%s290 + $0x10] sm:$0xff] %vm452, %v576
        %582 = vst.msk [vmem:[%s290 + $0x18] sm:$0xff] %vm452, %v578
        %583 = vrot.lane.b32.xlu0 %v329, 64
        %v584 = vpop.permute.xlu0 %583
        %585 = vrot.lane.b32.xlu0 %v333, 64
        %v586 = vpop.permute.xlu0 %585
        %587 = vrot.lane.b32.xlu0 %v336, 64
        %v588 = vpop.permute.xlu0 %587
        %589 = vrot.lane.b32.xlu0 %v339, 64
        %v590 = vpop.permute.xlu0 %589
        %v595 = vrot.slane %v588, 4
        %v596 = vsel %vm342, %v595, %v584
        %v597 = vrot.slane %v584, 4
        %v598 = vsel %vm342, %v588, %v597
        %v600 = vunpack.c.l.s4 1983009808
        %v601 = vunpack.c.0.s8 %v600
        %v602 = vperm.slane %v596, %v601
        %v604 = vunpack.c.l.s4 1983009808
        %v605 = vunpack.c.0.s8 %v604
        %v606 = vperm.slane %v598, %v605
        %v607 = vrot.slane %v590, 4
        %v608 = vsel %vm342, %v607, %v586
        %v609 = vrot.slane %v586, 4
        %v610 = vsel %vm342, %v590, %v609
        %v612 = vunpack.c.l.s4 1983009808
        %v613 = vunpack.c.0.s8 %v612
        %v614 = vperm.slane %v608, %v613
        %v616 = vunpack.c.l.s4 1983009808
        %v617 = vunpack.c.0.s8 %v616
        %v618 = vperm.slane %v610, %v617
        %v619 = vrot.slane %v614, 4
        %v620 = vsel %vm342, %v619, %v602
        %v621 = vrot.slane %v602, 4
        %v622 = vsel %vm342, %v614, %v621
        %v624 = vunpack.c.l.s4 1934713408
        %v625 = vunpack.c.0.s8 %v624
        %v626 = vperm.slane %v620, %v625
        %v628 = vunpack.c.l.s4 1934713408
        %v629 = vunpack.c.0.s8 %v628
        %v630 = vperm.slane %v622, %v629
        %v631 = vrot.slane %v618, 4
        %v632 = vsel %vm342, %v631, %v606
        %v633 = vrot.slane %v606, 4
        %v634 = vsel %vm342, %v618, %v633
        %v636 = vunpack.c.l.s4 1934713408
        %v637 = vunpack.c.0.s8 %v636
        %v638 = vperm.slane %v632, %v637
        %v640 = vunpack.c.l.s4 1934713408
        %v641 = vunpack.c.0.s8 %v640
        %v642 = vperm.slane %v634, %v641
        %v643 = vrot.slane %v626, 4
        %v644 = vsel %vm342, 0.0, %v643
        %v645 = vrot.slane %v630, 4
        %v646 = vsel %vm342, 0.0, %v645
        %v647 = vrot.slane %v638, 4
        %v648 = vsel %vm342, 0.0, %v647
        %v649 = vrot.slane %v642, 4
        %v650 = vsel %vm342, 0.0, %v649
        %v651 = vsel %vm342, %v645, %v626
        %v653 = vunpack.c.l.s4 1983009808
        %v654 = vunpack.c.0.s8 %v653
        %v655 = vperm.slane %v651, %v654
        %v656 = vrot.slane %v646, 4
        %v657 = vsel %vm342, %v656, %v644
        %v659 = vunpack.c.l.s4 1983009808
        %v660 = vunpack.c.0.s8 %v659
        %v661 = vperm.slane %v657, %v660
        %v662 = vsel %vm342, %v649, %v638
        %v664 = vunpack.c.l.s4 1983009808
        %v665 = vunpack.c.0.s8 %v664
        %v666 = vperm.slane %v662, %v665
        %v667 = vrot.slane %v650, 4
        %v668 = vsel %vm342, %v667, %v648
        %v670 = vunpack.c.l.s4 1983009808
        %v671 = vunpack.c.0.s8 %v670
        %v672 = vperm.slane %v668, %v671
        %v673 = vrot.slane %v661, 4
        %v674 = vsel %vm342, %v673, %v655
        %v675 = vrot.slane %v655, 4
        %v676 = vsel %vm342, %v661, %v675
        %v678 = vunpack.c.l.s4 1934713408
        %v679 = vunpack.c.0.s8 %v678
        %v680 = vperm.slane %v674, %v679
        %v682 = vunpack.c.l.s4 1934713408
        %v683 = vunpack.c.0.s8 %v682
        %v684 = vperm.slane %v676, %v683
        %v685 = vrot.slane %v672, 4
        %v686 = vsel %vm342, %v685, %v666
        %v687 = vrot.slane %v666, 4
        %v688 = vsel %vm342, %v672, %v687
        %v690 = vunpack.c.l.s4 1934713408
        %v691 = vunpack.c.0.s8 %v690
        %v692 = vperm.slane %v686, %v691
        %v694 = vunpack.c.l.s4 1934713408
        %v695 = vunpack.c.0.s8 %v694
        %v696 = vperm.slane %v688, %v695
        %v697 = vrot.slane %v692, 4
        %v698 = vsel %vm342, %v697, %v680
        %v699 = vrot.slane %v680, 4
        %v700 = vsel %vm342, %v692, %v699
        %v701 = vrot.slane %v696, 4
        %v702 = vsel %vm342, %v701, %v684
        %v703 = vrot.slane %v684, 4
        %v704 = vsel %vm342, %v696, %v703
        %705 = vst.msk [vmem:[%s297] sm:$0xff] %vm452, %v698
        %706 = vst.msk [vmem:[%s297 + $0x8] sm:$0xff] %vm452, %v700
        %707 = vst.msk [vmem:[%s297 + $0x10] sm:$0xff] %vm452, %v702
        %708 = vst.msk [vmem:[%s297 + $0x18] sm:$0xff] %vm452, %v704
        %s709 = sand.u32 %s119, 1
        %s710 = scalar_lea.sflag [#allocation4], %s709
        %s711 = sand.u32 %s119, 1
        %s712 = smul.addr %s711, 32
        %s713 = scalar_lea.vmem [#allocation7], %s712
        %s714 = sand.u32 %s27, 1
        %s715 = scalar_lea.sflag [#allocation9], %s714
        %s716 = sand.u32 %s147, 1
        %s717 = smul.addr %s716, 32
        %s718 = scalar_lea.vmem [#allocation8], %s717
        %s719 = sand.u32 %s27, 1
        %s720 = scalar_lea.sflag [#allocation9], %s719
        %s721 = sand.u32 %s175, 1
        %s722 = smul.addr %s721, 32
        %s723 = scalar_lea.vmem [#allocation10], %s722
        // Predicated region
        $region41: #{tpu_custom_call.1} parent=31 // pred_check
          %p724 = pneg %p129
        $region42: #{tpu_custom_call.1} parent=31 // pred_check_branch
          %726 = sbr.rel (%p724) target = $region44
        $region43: #{tpu_custom_call.1} parent=31 // pred_region
          %728 = vsyncadd %s710, 0
          %s729 = smul.addr %s31, 4
          %s730 = sadd.s32 %s32, %s729
          %s731 = smul.addr %s730, 8
          %s732 = scalar_lea.hbm %s3, %s731
          %s733 = sshll.u32 %s713, 4
          %s734 = int_to_ptr.vmem [resolvable:$true] %s733
          %s735 = sshll.u32 %s732, 4
          %s736 = int_to_ptr.hbm [resolvable:$true] %s735
          %741 = dma.vmem_to_hbm [thread:$0]  %s734, 512, %s736, %s710, 128, 128, 8
        $region44: #{tpu_custom_call.1} parent=31 // pred_fallthru
          _
        // Predicated region
        $region45: #{tpu_custom_call.1} parent=31 // pred_check
          %p742 = pneg %p157
        $region46: #{tpu_custom_call.1} parent=31 // pred_check_branch
          %744 = sbr.rel (%p742) target = $region48
        $region47: #{tpu_custom_call.1} parent=31 // pred_region
          %746 = vsyncadd %s715, 0
          %s747 = smul.addr %s31, 4
          %s748 = sadd.s32 %s32, %s747
          %s749 = smul.addr %s748, 8
          %s750 = scalar_lea.hbm %s4, %s749
          %s751 = sshll.u32 %s718, 4
          %s752 = int_to_ptr.vmem [resolvable:$true] %s751
          %s753 = sshll.u32 %s750, 4
          %s754 = int_to_ptr.hbm [resolvable:$true] %s753
          %759 = dma.vmem_to_hbm [thread:$0]  %s752, 512, %s754, %s715, 128, 128, 8
        $region48: #{tpu_custom_call.1} parent=31 // pred_fallthru
          _
        // Predicated region
        $region49: #{tpu_custom_call.1} parent=31 // pred_check
          %p760 = pneg %p185
        $region50: #{tpu_custom_call.1} parent=31 // pred_check_branch
          %762 = sbr.rel (%p760) target = $region52
        $region51: #{tpu_custom_call.1} parent=31 // pred_region
          %764 = vsyncadd %s720, 0
          %s765 = smul.addr %s31, 4
          %s766 = sadd.s32 %s32, %s765
          %s767 = smul.addr %s766, 8
          %s768 = scalar_lea.hbm %s5, %s767
          %s769 = sshll.u32 %s723, 4
          %s770 = int_to_ptr.vmem [resolvable:$true] %s769
          %s771 = sshll.u32 %s768, 4
          %s772 = int_to_ptr.hbm [resolvable:$true] %s771
          %777 = dma.vmem_to_hbm [thread:$0]  %s770, 512, %s772, %s720, 128, 128, 8
        $region52: #{tpu_custom_call.1} parent=31 // pred_fallthru
          _
      $region32: #{tpu_custom_call.1} parent=5 // pred_fallthru
        _
      %p778 = scmp.le.s32.totalorder 2, %s22
      // Predicated region
      $region53: #{tpu_custom_call.1} parent=5 // pred_check
        %p779 = pneg %p778
      $region54: #{tpu_custom_call.1} parent=5 // pred_check_branch
        %781 = sbr.rel (%p779) target = $region56
      $region55: #{tpu_custom_call.1} parent=5 // pred_region
        %s782 = ssub.s32 %s22, 2
        // Predicated region
        $region57: #{tpu_custom_call.1} parent=55 // pred_check
          %p783 = pneg %p135
        $region58: #{tpu_custom_call.1} parent=55 // pred_check_branch
          %785 = sbr.rel (%p783) target = $region60
        $region59: #{tpu_custom_call.1} parent=55 // pred_region
          %s786 = sand.u32 %s120, 1
          %s787 = scalar_lea.sflag [#allocation4], %s786
          %s788 = sand.u32 %s120, 1
          %s789 = smul.addr %s788, 32
          %s790 = scalar_lea.vmem [#allocation7], %s789
          %792 = dma.done %s787, 512
        $region60: #{tpu_custom_call.1} parent=55 // pred_fallthru
          _
        // Predicated region
        $region61: #{tpu_custom_call.1} parent=55 // pred_check
          %p793 = pneg %p163
        $region62: #{tpu_custom_call.1} parent=55 // pred_check_branch
          %795 = sbr.rel (%p793) target = $region64
        $region63: #{tpu_custom_call.1} parent=55 // pred_region
          %s796 = sand.u32 %s28, 1
          %s797 = scalar_lea.sflag [#allocation9], %s796
          %s798 = sand.u32 %s148, 1
          %s799 = smul.addr %s798, 32
          %s800 = scalar_lea.vmem [#allocation8], %s799
          %802 = dma.done %s797, 512
        $region64: #{tpu_custom_call.1} parent=55 // pred_fallthru
          _
        // Predicated region
        $region65: #{tpu_custom_call.1} parent=55 // pred_check
          %p803 = pneg %p191
        $region66: #{tpu_custom_call.1} parent=55 // pred_check_branch
          %805 = sbr.rel (%p803) target = $region68
        $region67: #{tpu_custom_call.1} parent=55 // pred_region
          %s806 = sand.u32 %s28, 1
          %s807 = scalar_lea.sflag [#allocation9], %s806
          %s808 = sand.u32 %s176, 1
          %s809 = smul.addr %s808, 32
          %s810 = scalar_lea.vmem [#allocation10], %s809
          %812 = dma.done %s807, 512
        $region68: #{tpu_custom_call.1} parent=55 // pred_fallthru
          _
      $region56: #{tpu_custom_call.1} parent=5 // pred_fallthru
        _
    $region6: #{tpu_custom_call.1} parent=1 // loop_footer
      %s26 = sadd.s32 1, %s22
    $region7: #{tpu_custom_call.1} parent=1 // loop_footer_branch
      %21 = sbr.rel target = $region3
    $region8: #{tpu_custom_call.1} parent=1 // loop_exit
      _
    %813 = vsyncpa [#allocation3], 1
    %s814 = scalar_lea.sflag [#allocation3], 1
    %815 = vsyncpa %s814, 1
    %816 = vsyncpa [#allocation6], 1
    %817 = vsyncpa [#allocation4], 1
    %s818 = scalar_lea.sflag [#allocation4], 1
    %819 = vsyncpa %s818, 1
    %820 = vsyncpa [#allocation9], 1
    %s821 = scalar_lea.sflag [#allocation9], 1
    %822 = vsyncpa %s821, 1

</llo_original>
